<compile_context>
chip_gen: v6e
topology: v6e:2x2x1
jax: 0.10.0
libtpu: 0.0.40
codegen_flags: <defaults>
</compile_context>

<pallas_src>
import numpy as np
import jax
import jax.numpy as jnp
from jax.experimental import pallas as pl
from jax.experimental.pallas import tpu as pltpu


# ------------------------- host-side parameter prep --------------------------
def _conv1d_block_weight(w, l_in, stride, pad):
    """w: PyTorch Conv1d weight (C_out, C_in, K). Returns ((L_in*C_in, L_out*C_out), L_out)."""
    c_out, c_in, k_sz = w.shape
    l_out = (l_in + 2 * pad - k_sz) // stride + 1
    big = np.zeros((l_in * c_in, l_out * c_out), np.float32)
    for t in range(l_out):
        for k in range(k_sz):
            i = t * stride + k - pad
            if 0 <= i < l_in:
                big[i * c_in:(i + 1) * c_in, t * c_out:(t + 1) * c_out] += w[:, :, k].T
    return big, l_out


def _conv_transpose1d_block_weight(w, l_in, stride, pad):
    """w: PyTorch ConvTranspose1d weight (C_in, C_out, K)."""
    c_in, c_out, k_sz = w.shape
    l_out = (l_in - 1) * stride - 2 * pad + k_sz
    big = np.zeros((l_in * c_in, l_out * c_out), np.float32)
    for t_out in range(l_out):
        for t_in in range(l_in):
            k = t_out + pad - t_in * stride
            if 0 <= k < k_sz:
                big[t_in * c_in:(t_in + 1) * c_in,
                    t_out * c_out:(t_out + 1) * c_out] += w[:, :, k]
    return big, l_out


def _bn_selectors(length, channels):
    """S[t*C + c, c] = 1 (flat->channel reduce) and its transpose (channel->flat bcast)."""
    sel = np.tile(np.eye(channels, dtype=np.float32), (length, 1))  # (L*C, C)
    return sel, np.ascontiguousarray(sel.T)                         # (C, L*C)


def prepare_generator_params(params, nz, nc):
    """One-time repacking of PyTorch-shaped parameters into kernel operands."""
    m = nz + nc
    w1 = np.asarray(params["w1"], np.float32)   # (4m, m, 2)   Conv1d
    w2 = np.asarray(params["w2"], np.float32)   # (4m, 2m, 5)  ConvTranspose1d
    w3 = np.asarray(params["w3"], np.float32)   # (2m, m, 4)   ConvTranspose1d
    w4 = np.asarray(params["w4"], np.float32)   # (m, 2, 2)    ConvTranspose1d

    big1, l1 = _conv1d_block_weight(w1, l_in=1, stride=1, pad=1)            # (m, 2*4m)
    big2, l2 = _conv_transpose1d_block_weight(w2, l1, stride=2, pad=1)      # (2*4m, 5*2m)
    big3, l3 = _conv_transpose1d_block_weight(w3, l2, stride=2, pad=0)      # (5*2m, 12*m)
    big4, l4 = _conv_transpose1d_block_weight(w4, l3, stride=2, pad=0)      # (12*m, 24*2)

    s1, t1 = _bn_selectors(l1, 4 * m)
    s2, t2 = _bn_selectors(l2, 2 * m)
    s3, t3 = _bn_selectors(l3, m)

    as_row = lambda v: np.asarray(v, np.float32).reshape(1, -1)
    prepped = {
        "W1": big1, "W2": big2, "W3": big3, "W4": big4,
        "S1": s1, "T1": t1, "g1": as_row(params["g1"]), "b1": as_row(params["b1"]),
        "S2": s2, "T2": t2, "g2": as_row(params["g2"]), "b2": as_row(params["b2"]),
        "S3": s3, "T3": t3, "g3": as_row(params["g3"]), "b3": as_row(params["b3"]),
    }
    return {k: jnp.asarray(v) for k, v in prepped.items()}


# --------------------------------- the kernel --------------------------------
def _bn_act_flat(x, sel, selT, gamma, beta, n_inv, leaky_slope=None):
    """Training-mode BatchNorm1d + activation on a flat (B, L*C) activation.

    sel:(L*C, C) reduces the flat layout to per-channel sums; selT broadcasts
    per-channel scale/shift back to the flat layout. Biased variance, eps=1e-5.
    """
    sums = jnp.dot(x, sel, preferred_element_type=jnp.float32)          # (B, C)
    mean_c = jnp.sum(sums, axis=0, keepdims=True) * n_inv               # (1, C)
    sq_sums = jnp.dot(x * x, sel, preferred_element_type=jnp.float32)   # (B, C)
    m2_c = jnp.sum(sq_sums, axis=0, keepdims=True) * n_inv              # (1, C)
    var_c = m2_c - mean_c * mean_c                                      # biased var
    scale_c = gamma * jax.lax.rsqrt(var_c + 1e-5)                       # (1, C)
    shift_c = beta - mean_c * scale_c                                   # (1, C)
    scale_f = jnp.dot(scale_c, selT, preferred_element_type=jnp.float32)  # (1, L*C)
    shift_f = jnp.dot(shift_c, selT, preferred_element_type=jnp.float32)  # (1, L*C)
    y = x * scale_f + shift_f
    if leaky_slope is None:
        return jnp.maximum(y, 0.0)
    return jnp.where(y >= 0.0, y, leaky_slope * y)


def _generator_kernel(x_ref,
                      w1_ref, s1_ref, t1_ref, g1_ref, b1_ref,
                      w2_ref, s2_ref, t2_ref, g2_ref, b2_ref,
                      w3_ref, s3_ref, t3_ref, g3_ref, b3_ref,
                      w4_ref, out_ref):
    batch = x_ref.shape[0]

    def bn_act(h, s_ref, t_ref, g_ref, b_ref, leaky=None):
        length = s_ref.shape[0] // s_ref.shape[1]          # static L of this layer
        return _bn_act_flat(h, s_ref[...], t_ref[...], g_ref[...], b_ref[...],
                            n_inv=1.0 / float(batch * length), leaky_slope=leaky)

    # Layer 1: Conv1d(m -> 4m) as one matmul, then BN + LeakyReLU(0.2).
    h = jnp.dot(x_ref[...], w1_ref[...], preferred_element_type=jnp.float32)
    h = bn_act(h, s1_ref, t1_ref, g1_ref, b1_ref, leaky=0.2)
    # Layer 2: ConvTranspose1d(4m -> 2m), BN + ReLU.
    h = jnp.dot(h, w2_ref[...], preferred_element_type=jnp.float32)
    h = bn_act(h, s2_ref, t2_ref, g2_ref, b2_ref)
    # Layer 3: ConvTranspose1d(2m -> m), BN + ReLU.
    h = jnp.dot(h, w3_ref[...], preferred_element_type=jnp.float32)
    h = bn_act(h, s3_ref, t3_ref, g3_ref, b3_ref)
    # Layer 4: ConvTranspose1d(m -> 2). Lane-dense flat (B, L4*2) store.
    out_ref[...] = jnp.dot(h, w4_ref[...], preferred_element_type=jnp.float32)


# --------------------------------- wrapper ------------------------------------
def ccnn_generator(z, c, prepped):
    """z: (B, nz, 1), c: (B, nc, 1) PyTorch NCL layout. Returns (B, 2, 24)."""
    batch = z.shape[0]
    # L0 = 1, so (B, m, 1) NCL flattens to (B, m) == flat (B, L0*C0).
    x = jnp.concatenate([z[:, :, 0], c[:, :, 0]], axis=1).astype(jnp.float32)
    l4_times2 = prepped["W4"].shape[1]                      # = 24 * 2 = 48 (static)

    vmem = lambda: pl.BlockSpec(memory_space=pltpu.MemorySpace.VMEM)
    out_flat = pl.pallas_call(
        _generator_kernel,
        out_shape=jax.ShapeDtypeStruct((batch, l4_times2), jnp.float32),
        in_specs=[vmem() for _ in range(17)],
        out_specs=vmem(),
    )(x,
      prepped["W1"], prepped["S1"], prepped["T1"], prepped["g1"], prepped["b1"],
      prepped["W2"], prepped["S2"], prepped["T2"], prepped["g2"], prepped["b2"],
      prepped["W3"], prepped["S3"], prepped["T3"], prepped["g3"], prepped["b3"],
      prepped["W4"])

    # Flat layout is [t0c0, t0c1, t1c0, ...] -> (B, 24, 2) -> NCL (B, 2, 24).
    l4 = l4_times2 // 2
    return jnp.transpose(out_flat.reshape(batch, l4, 2), (0, 2, 1))


# ----------------------------------- main -------------------------------------
if __name__ == "__main__":
    nz, nc, B = 4, 2, 2
    m = nz + nc

    key = jax.random.PRNGKey(0)
    k_z, k_c, k1, k2, k3, k4 = jax.random.split(key, 6)

    # Inputs: latent code and covariates as length-1 sequences (NCL).
    z = jax.random.normal(k_z, (B, nz, 1), dtype=jnp.float32)
    c = jax.random.normal(k_c, (B, nc, 1), dtype=jnp.float32)

    # Deterministic synthetic parameters (PyTorch parameter shapes).
    params = {
        "w1": 0.3 * jax.random.normal(k1, (4 * m, m, 2), dtype=jnp.float32),      # Conv1d
        "w2": 0.3 * jax.random.normal(k2, (4 * m, 2 * m, 5), dtype=jnp.float32),  # ConvTranspose1d
        "w3": 0.3 * jax.random.normal(k3, (2 * m, m, 4), dtype=jnp.float32),      # ConvTranspose1d
        "w4": 0.3 * jax.random.normal(k4, (m, 2, 2), dtype=jnp.float32),          # ConvTranspose1d
        # BatchNorm affine params (PyTorch default init: gamma=1, beta=0).
        "g1": jnp.ones((4 * m,), jnp.float32), "b1": jnp.zeros((4 * m,), jnp.float32),
        "g2": jnp.ones((2 * m,), jnp.float32), "b2": jnp.zeros((2 * m,), jnp.float32),
        "g3": jnp.ones((m,), jnp.float32),     "b3": jnp.zeros((m,), jnp.float32),
    }

    # One-time parameter prep (hoisted out of the per-call path).
    prepped = prepare_generator_params(params, nz, nc)

    generator = jax.jit(ccnn_generator)
    out = generator(z, c, prepped)
    out = jax.block_until_ready(out)
    assert out.shape == (B, 2, 24), out.shape
    assert bool(jnp.all(jnp.isfinite(out)))
    print("KERNEL_OK")
</pallas_src>

<mosaic_0001>
module attributes {stable_mosaic.version = 11 : i64} {
  func.func @_generator_kernel(%arg0: memref<2x6xf32, #tpu.memory_space<vmem>>, %arg1: memref<6x48xf32, #tpu.memory_space<vmem>>, %arg2: memref<48x24xf32, #tpu.memory_space<vmem>>, %arg3: memref<24x48xf32, #tpu.memory_space<vmem>>, %arg4: memref<1x24xf32, #tpu.memory_space<vmem>>, %arg5: memref<1x24xf32, #tpu.memory_space<vmem>>, %arg6: memref<48x60xf32, #tpu.memory_space<vmem>>, %arg7: memref<60x12xf32, #tpu.memory_space<vmem>>, %arg8: memref<12x60xf32, #tpu.memory_space<vmem>>, %arg9: memref<1x12xf32, #tpu.memory_space<vmem>>, %arg10: memref<1x12xf32, #tpu.memory_space<vmem>>, %arg11: memref<60x72xf32, #tpu.memory_space<vmem>>, %arg12: memref<72x6xf32, #tpu.memory_space<vmem>>, %arg13: memref<6x72xf32, #tpu.memory_space<vmem>>, %arg14: memref<1x6xf32, #tpu.memory_space<vmem>>, %arg15: memref<1x6xf32, #tpu.memory_space<vmem>>, %arg16: memref<72x48xf32, #tpu.memory_space<vmem>>, %arg17: memref<2x48xf32, #tpu.memory_space<vmem>>) attributes {dimension_semantics = [], scalar_prefetch = 0 : i64, scratch_operands = 0 : i64, tpu.core_type = #tpu.core_type<tc>} {
    %c0 = arith.constant 0 : index
    %c0_0 = arith.constant 0 : index
    %0 = vector.load %arg0[%c0, %c0_0] : memref<2x6xf32, #tpu.memory_space<vmem>>, vector<2x6xf32>
    %c0_1 = arith.constant 0 : index
    %c0_2 = arith.constant 0 : index
    %1 = vector.load %arg1[%c0_1, %c0_2] : memref<6x48xf32, #tpu.memory_space<vmem>>, vector<6x48xf32>
    %cst = arith.constant dense<0.000000e+00> : vector<2x48xf32>
    %2 = tpu.matmul %0, %1, %cst {dimension_numbers = #tpu.dot_dimension_numbers<[1], [0], [0], [1], [0, 0, 1, 1], [], []>} : vector<2x6xf32>, vector<6x48xf32>, vector<2x48xf32> -> vector<2x48xf32>
    %c0_3 = arith.constant 0 : index
    %c0_4 = arith.constant 0 : index
    %3 = vector.load %arg2[%c0_3, %c0_4] : memref<48x24xf32, #tpu.memory_space<vmem>>, vector<48x24xf32>
    %c0_5 = arith.constant 0 : index
    %c0_6 = arith.constant 0 : index
    %4 = vector.load %arg3[%c0_5, %c0_6] : memref<24x48xf32, #tpu.memory_space<vmem>>, vector<24x48xf32>
    %c0_7 = arith.constant 0 : index
    %c0_8 = arith.constant 0 : index
    %5 = vector.load %arg4[%c0_7, %c0_8] : memref<1x24xf32, #tpu.memory_space<vmem>>, vector<1x24xf32>
    %c0_9 = arith.constant 0 : index
    %c0_10 = arith.constant 0 : index
    %6 = vector.load %arg5[%c0_9, %c0_10] : memref<1x24xf32, #tpu.memory_space<vmem>>, vector<1x24xf32>
    %cst_11 = arith.constant dense<0.000000e+00> : vector<2x24xf32>
    %7 = tpu.matmul %2, %3, %cst_11 {dimension_numbers = #tpu.dot_dimension_numbers<[1], [0], [0], [1], [0, 0, 1, 1], [], []>} : vector<2x48xf32>, vector<48x24xf32>, vector<2x24xf32> -> vector<2x24xf32>
    %cst_12 = arith.constant dense<0.000000e+00> : vector<24xf32>
    %8 = vector.multi_reduction <add>, %7, %cst_12 [0] : vector<2x24xf32> to vector<24xf32>
    %9 = vector.shape_cast %8 : vector<24xf32> to vector<1x24xf32>
    %cst_13 = arith.constant 2.500000e-01 : f32
    %10 = vector.broadcast %cst_13 : f32 to vector<1x24xf32>
    %11 = arith.mulf %9, %10 : vector<1x24xf32>
    %12 = arith.mulf %2, %2 : vector<2x48xf32>
    %cst_14 = arith.constant dense<0.000000e+00> : vector<2x24xf32>
    %13 = tpu.matmul %12, %3, %cst_14 {dimension_numbers = #tpu.dot_dimension_numbers<[1], [0], [0], [1], [0, 0, 1, 1], [], []>} : vector<2x48xf32>, vector<48x24xf32>, vector<2x24xf32> -> vector<2x24xf32>
    %cst_15 = arith.constant dense<0.000000e+00> : vector<24xf32>
    %14 = vector.multi_reduction <add>, %13, %cst_15 [0] : vector<2x24xf32> to vector<24xf32>
    %15 = vector.shape_cast %14 : vector<24xf32> to vector<1x24xf32>
    %cst_16 = arith.constant 2.500000e-01 : f32
    %16 = vector.broadcast %cst_16 : f32 to vector<1x24xf32>
    %17 = arith.mulf %15, %16 : vector<1x24xf32>
    %18 = arith.mulf %11, %11 : vector<1x24xf32>
    %19 = arith.subf %17, %18 : vector<1x24xf32>
    %cst_17 = arith.constant 9.99999974E-6 : f32
    %20 = vector.broadcast %cst_17 : f32 to vector<1x24xf32>
    %21 = arith.addf %19, %20 : vector<1x24xf32>
    %22 = math.rsqrt %21 : vector<1x24xf32>
    %23 = arith.mulf %5, %22 : vector<1x24xf32>
    %24 = arith.mulf %11, %23 : vector<1x24xf32>
    %25 = arith.subf %6, %24 : vector<1x24xf32>
    %cst_18 = arith.constant dense<0.000000e+00> : vector<1x48xf32>
    %26 = tpu.matmul %23, %4, %cst_18 {dimension_numbers = #tpu.dot_dimension_numbers<[1], [0], [0], [1], [0, 0, 1, 1], [], []>} : vector<1x24xf32>, vector<24x48xf32>, vector<1x48xf32> -> vector<1x48xf32>
    %cst_19 = arith.constant dense<0.000000e+00> : vector<1x48xf32>
    %27 = tpu.matmul %25, %4, %cst_19 {dimension_numbers = #tpu.dot_dimension_numbers<[1], [0], [0], [1], [0, 0, 1, 1], [], []>} : vector<1x24xf32>, vector<24x48xf32>, vector<1x48xf32> -> vector<1x48xf32>
    %28 = vector.broadcast %26 : vector<1x48xf32> to vector<2x48xf32>
    %29 = arith.mulf %2, %28 : vector<2x48xf32>
    %30 = vector.broadcast %27 : vector<1x48xf32> to vector<2x48xf32>
    %31 = arith.addf %29, %30 : vector<2x48xf32>
    %cst_20 = arith.constant 0.000000e+00 : f32
    %32 = vector.broadcast %cst_20 : f32 to vector<2x48xf32>
    %33 = arith.cmpf oge, %31, %32 : vector<2x48xf32>
    %cst_21 = arith.constant 2.000000e-01 : f32
    %34 = vector.broadcast %cst_21 : f32 to vector<2x48xf32>
    %35 = arith.mulf %34, %31 : vector<2x48xf32>
    %36 = arith.select %33, %31, %35 : vector<2x48xi1>, vector<2x48xf32>
    %c0_22 = arith.constant 0 : index
    %c0_23 = arith.constant 0 : index
    %37 = vector.load %arg6[%c0_22, %c0_23] : memref<48x60xf32, #tpu.memory_space<vmem>>, vector<48x60xf32>
    %cst_24 = arith.constant dense<0.000000e+00> : vector<2x60xf32>
    %38 = tpu.matmul %36, %37, %cst_24 {dimension_numbers = #tpu.dot_dimension_numbers<[1], [0], [0], [1], [0, 0, 1, 1], [], []>} : vector<2x48xf32>, vector<48x60xf32>, vector<2x60xf32> -> vector<2x60xf32>
    %c0_25 = arith.constant 0 : index
    %c0_26 = arith.constant 0 : index
    %39 = vector.load %arg7[%c0_25, %c0_26] : memref<60x12xf32, #tpu.memory_space<vmem>>, vector<60x12xf32>
    %c0_27 = arith.constant 0 : index
    %c0_28 = arith.constant 0 : index
    %40 = vector.load %arg8[%c0_27, %c0_28] : memref<12x60xf32, #tpu.memory_space<vmem>>, vector<12x60xf32>
    %c0_29 = arith.constant 0 : index
    %c0_30 = arith.constant 0 : index
    %41 = vector.load %arg9[%c0_29, %c0_30] : memref<1x12xf32, #tpu.memory_space<vmem>>, vector<1x12xf32>
    %c0_31 = arith.constant 0 : index
    %c0_32 = arith.constant 0 : index
    %42 = vector.load %arg10[%c0_31, %c0_32] : memref<1x12xf32, #tpu.memory_space<vmem>>, vector<1x12xf32>
    %cst_33 = arith.constant dense<0.000000e+00> : vector<2x12xf32>
    %43 = tpu.matmul %38, %39, %cst_33 {dimension_numbers = #tpu.dot_dimension_numbers<[1], [0], [0], [1], [0, 0, 1, 1], [], []>} : vector<2x60xf32>, vector<60x12xf32>, vector<2x12xf32> -> vector<2x12xf32>
    %cst_34 = arith.constant dense<0.000000e+00> : vector<12xf32>
    %44 = vector.multi_reduction <add>, %43, %cst_34 [0] : vector<2x12xf32> to vector<12xf32>
    %45 = vector.shape_cast %44 : vector<12xf32> to vector<1x12xf32>
    %cst_35 = arith.constant 1.000000e-01 : f32
    %46 = vector.broadcast %cst_35 : f32 to vector<1x12xf32>
    %47 = arith.mulf %45, %46 : vector<1x12xf32>
    %48 = arith.mulf %38, %38 : vector<2x60xf32>
    %cst_36 = arith.constant dense<0.000000e+00> : vector<2x12xf32>
    %49 = tpu.matmul %48, %39, %cst_36 {dimension_numbers = #tpu.dot_dimension_numbers<[1], [0], [0], [1], [0, 0, 1, 1], [], []>} : vector<2x60xf32>, vector<60x12xf32>, vector<2x12xf32> -> vector<2x12xf32>
    %cst_37 = arith.constant dense<0.000000e+00> : vector<12xf32>
    %50 = vector.multi_reduction <add>, %49, %cst_37 [0] : vector<2x12xf32> to vector<12xf32>
    %51 = vector.shape_cast %50 : vector<12xf32> to vector<1x12xf32>
    %cst_38 = arith.constant 1.000000e-01 : f32
    %52 = vector.broadcast %cst_38 : f32 to vector<1x12xf32>
    %53 = arith.mulf %51, %52 : vector<1x12xf32>
    %54 = arith.mulf %47, %47 : vector<1x12xf32>
    %55 = arith.subf %53, %54 : vector<1x12xf32>
    %cst_39 = arith.constant 9.99999974E-6 : f32
    %56 = vector.broadcast %cst_39 : f32 to vector<1x12xf32>
    %57 = arith.addf %55, %56 : vector<1x12xf32>
    %58 = math.rsqrt %57 : vector<1x12xf32>
    %59 = arith.mulf %41, %58 : vector<1x12xf32>
    %60 = arith.mulf %47, %59 : vector<1x12xf32>
    %61 = arith.subf %42, %60 : vector<1x12xf32>
    %cst_40 = arith.constant dense<0.000000e+00> : vector<1x60xf32>
    %62 = tpu.matmul %59, %40, %cst_40 {dimension_numbers = #tpu.dot_dimension_numbers<[1], [0], [0], [1], [0, 0, 1, 1], [], []>} : vector<1x12xf32>, vector<12x60xf32>, vector<1x60xf32> -> vector<1x60xf32>
    %cst_41 = arith.constant dense<0.000000e+00> : vector<1x60xf32>
    %63 = tpu.matmul %61, %40, %cst_41 {dimension_numbers = #tpu.dot_dimension_numbers<[1], [0], [0], [1], [0, 0, 1, 1], [], []>} : vector<1x12xf32>, vector<12x60xf32>, vector<1x60xf32> -> vector<1x60xf32>
    %64 = vector.broadcast %62 : vector<1x60xf32> to vector<2x60xf32>
    %65 = arith.mulf %38, %64 : vector<2x60xf32>
    %66 = vector.broadcast %63 : vector<1x60xf32> to vector<2x60xf32>
    %67 = arith.addf %65, %66 : vector<2x60xf32>
    %cst_42 = arith.constant 0.000000e+00 : f32
    %68 = vector.broadcast %cst_42 : f32 to vector<2x60xf32>
    %69 = arith.maximumf %67, %68 : vector<2x60xf32>
    %c0_43 = arith.constant 0 : index
    %c0_44 = arith.constant 0 : index
    %70 = vector.load %arg11[%c0_43, %c0_44] : memref<60x72xf32, #tpu.memory_space<vmem>>, vector<60x72xf32>
    %cst_45 = arith.constant dense<0.000000e+00> : vector<2x72xf32>
    %71 = tpu.matmul %69, %70, %cst_45 {dimension_numbers = #tpu.dot_dimension_numbers<[1], [0], [0], [1], [0, 0, 1, 1], [], []>} : vector<2x60xf32>, vector<60x72xf32>, vector<2x72xf32> -> vector<2x72xf32>
    %c0_46 = arith.constant 0 : index
    %c0_47 = arith.constant 0 : index
    %72 = vector.load %arg12[%c0_46, %c0_47] : memref<72x6xf32, #tpu.memory_space<vmem>>, vector<72x6xf32>
    %c0_48 = arith.constant 0 : index
    %c0_49 = arith.constant 0 : index
    %73 = vector.load %arg13[%c0_48, %c0_49] : memref<6x72xf32, #tpu.memory_space<vmem>>, vector<6x72xf32>
    %c0_50 = arith.constant 0 : index
    %c0_51 = arith.constant 0 : index
    %74 = vector.load %arg14[%c0_50, %c0_51] : memref<1x6xf32, #tpu.memory_space<vmem>>, vector<1x6xf32>
    %c0_52 = arith.constant 0 : index
    %c0_53 = arith.constant 0 : index
    %75 = vector.load %arg15[%c0_52, %c0_53] : memref<1x6xf32, #tpu.memory_space<vmem>>, vector<1x6xf32>
    %cst_54 = arith.constant dense<0.000000e+00> : vector<2x6xf32>
    %76 = tpu.matmul %71, %72, %cst_54 {dimension_numbers = #tpu.dot_dimension_numbers<[1], [0], [0], [1], [0, 0, 1, 1], [], []>} : vector<2x72xf32>, vector<72x6xf32>, vector<2x6xf32> -> vector<2x6xf32>
    %cst_55 = arith.constant dense<0.000000e+00> : vector<6xf32>
    %77 = vector.multi_reduction <add>, %76, %cst_55 [0] : vector<2x6xf32> to vector<6xf32>
    %78 = vector.shape_cast %77 : vector<6xf32> to vector<1x6xf32>
    %cst_56 = arith.constant 0.0416666679 : f32
    %79 = vector.broadcast %cst_56 : f32 to vector<1x6xf32>
    %80 = arith.mulf %78, %79 : vector<1x6xf32>
    %81 = arith.mulf %71, %71 : vector<2x72xf32>
    %cst_57 = arith.constant dense<0.000000e+00> : vector<2x6xf32>
    %82 = tpu.matmul %81, %72, %cst_57 {dimension_numbers = #tpu.dot_dimension_numbers<[1], [0], [0], [1], [0, 0, 1, 1], [], []>} : vector<2x72xf32>, vector<72x6xf32>, vector<2x6xf32> -> vector<2x6xf32>
    %cst_58 = arith.constant dense<0.000000e+00> : vector<6xf32>
    %83 = vector.multi_reduction <add>, %82, %cst_58 [0] : vector<2x6xf32> to vector<6xf32>
    %84 = vector.shape_cast %83 : vector<6xf32> to vector<1x6xf32>
    %cst_59 = arith.constant 0.0416666679 : f32
    %85 = vector.broadcast %cst_59 : f32 to vector<1x6xf32>
    %86 = arith.mulf %84, %85 : vector<1x6xf32>
    %87 = arith.mulf %80, %80 : vector<1x6xf32>
    %88 = arith.subf %86, %87 : vector<1x6xf32>
    %cst_60 = arith.constant 9.99999974E-6 : f32
    %89 = vector.broadcast %cst_60 : f32 to vector<1x6xf32>
    %90 = arith.addf %88, %89 : vector<1x6xf32>
    %91 = math.rsqrt %90 : vector<1x6xf32>
    %92 = arith.mulf %74, %91 : vector<1x6xf32>
    %93 = arith.mulf %80, %92 : vector<1x6xf32>
    %94 = arith.subf %75, %93 : vector<1x6xf32>
    %cst_61 = arith.constant dense<0.000000e+00> : vector<1x72xf32>
    %95 = tpu.matmul %92, %73, %cst_61 {dimension_numbers = #tpu.dot_dimension_numbers<[1], [0], [0], [1], [0, 0, 1, 1], [], []>} : vector<1x6xf32>, vector<6x72xf32>, vector<1x72xf32> -> vector<1x72xf32>
    %cst_62 = arith.constant dense<0.000000e+00> : vector<1x72xf32>
    %96 = tpu.matmul %94, %73, %cst_62 {dimension_numbers = #tpu.dot_dimension_numbers<[1], [0], [0], [1], [0, 0, 1, 1], [], []>} : vector<1x6xf32>, vector<6x72xf32>, vector<1x72xf32> -> vector<1x72xf32>
    %97 = vector.broadcast %95 : vector<1x72xf32> to vector<2x72xf32>
    %98 = arith.mulf %71, %97 : vector<2x72xf32>
    %99 = vector.broadcast %96 : vector<1x72xf32> to vector<2x72xf32>
    %100 = arith.addf %98, %99 : vector<2x72xf32>
    %cst_63 = arith.constant 0.000000e+00 : f32
    %101 = vector.broadcast %cst_63 : f32 to vector<2x72xf32>
    %102 = arith.maximumf %100, %101 : vector<2x72xf32>
    %c0_64 = arith.constant 0 : index
    %c0_65 = arith.constant 0 : index
    %103 = vector.load %arg16[%c0_64, %c0_65] : memref<72x48xf32, #tpu.memory_space<vmem>>, vector<72x48xf32>
    %cst_66 = arith.constant dense<0.000000e+00> : vector<2x48xf32>
    %104 = tpu.matmul %102, %103, %cst_66 {dimension_numbers = #tpu.dot_dimension_numbers<[1], [0], [0], [1], [0, 0, 1, 1], [], []>} : vector<2x72xf32>, vector<72x48xf32>, vector<2x48xf32> -> vector<2x48xf32>
    %c0_67 = arith.constant 0 : index
    %c0_68 = arith.constant 0 : index
    %105 = vector.load %arg17[%c0_67, %c0_68] : memref<2x48xf32, #tpu.memory_space<vmem>>, vector<2x48xf32>
    tpu.vector_store %arg17[%c0_67, %c0_68], %104 {strides = array<i32>} : memref<2x48xf32, #tpu.memory_space<vmem>>, vector<2x48xf32>,
    return
  }
}

</mosaic_0001>

<llo_original>
// kernel: ccnn_generator.1
$region0: #{ccnn_generator.1}
  #allocation0 [shape = 'u32[]', space=smem, size = 0x4, offset = 0x4, fixed_abs, tag = 'smem constant byte address 0x4 - core index']
  #allocation1 [shape = 'u32[144,128]{1,0:T(1,128)}', space=vmem, size = 0x12000, scoped, tag = 'internal scratch']
  %s0 = inlined_call_operand.vmem [shape: f32[2,6], index: 0, kind: input, shape index: {}]
  %s1 = inlined_call_operand.vmem [shape: f32[6,48], index: 1, kind: input, shape index: {}]
  %s2 = inlined_call_operand.vmem [shape: f32[48,24], index: 2, kind: input, shape index: {}]
  %s3 = inlined_call_operand.vmem [shape: f32[24,48], index: 3, kind: input, shape index: {}]
  %s4 = inlined_call_operand.vmem [shape: f32[1,24], index: 4, kind: input, shape index: {}]
  %s5 = inlined_call_operand.vmem [shape: f32[1,24], index: 5, kind: input, shape index: {}]
  %s6 = inlined_call_operand.vmem [shape: f32[48,60], index: 6, kind: input, shape index: {}]
  %s7 = inlined_call_operand.vmem [shape: f32[60,12], index: 7, kind: input, shape index: {}]
  %s8 = inlined_call_operand.vmem [shape: f32[12,60], index: 8, kind: input, shape index: {}]
  %s9 = inlined_call_operand.vmem [shape: f32[1,12], index: 9, kind: input, shape index: {}]
  %s10 = inlined_call_operand.vmem [shape: f32[1,12], index: 10, kind: input, shape index: {}]
  %s11 = inlined_call_operand.vmem [shape: f32[60,72], index: 11, kind: input, shape index: {}]
  %s12 = inlined_call_operand.vmem [shape: f32[72,6], index: 12, kind: input, shape index: {}]
  %s13 = inlined_call_operand.vmem [shape: f32[6,72], index: 13, kind: input, shape index: {}]
  %s14 = inlined_call_operand.vmem [shape: f32[1,6], index: 14, kind: input, shape index: {}]
  %s15 = inlined_call_operand.vmem [shape: f32[1,6], index: 15, kind: input, shape index: {}]
  %s16 = inlined_call_operand.vmem [shape: f32[72,48], index: 16, kind: input, shape index: {}]
  %s17 = inlined_call_operand.vmem [shape: f32[2,48], index: 17, kind: output, shape index: {}]
  %s18 = sld [smem:[#allocation0]]
  $region78: #{ccnn_generator.1} parent=0
    _
  %s20 = ssub.s32 1, %s18
  %s21 = scalar_select 0, %s20, %s18
  // Predicated region
  $region2: #{ccnn_generator.1} parent=0 // pred_check
    _
  $region3: #{ccnn_generator.1} parent=0 // pred_check_branch
    %23 = sbr.rel (0) target = $region5
  $region4: #{ccnn_generator.1} parent=0 // pred_region
    _
  $region5: #{ccnn_generator.1} parent=0 // pred_fallthru
    _
  // Predicated region
  $region6: #{ccnn_generator.1} parent=0 // pred_check
    _
  $region7: #{ccnn_generator.1} parent=0 // pred_check_branch
    %25 = sbr.rel (0) target = $region9
  $region8: #{ccnn_generator.1} parent=0 // pred_region
    _
  $region9: #{ccnn_generator.1} parent=0 // pred_fallthru
    _
  // Predicated region
  $region10: #{ccnn_generator.1} parent=0 // pred_check
    _
  $region11: #{ccnn_generator.1} parent=0 // pred_check_branch
    %27 = sbr.rel (0) target = $region13
  $region12: #{ccnn_generator.1} parent=0 // pred_region
    _
  $region13: #{ccnn_generator.1} parent=0 // pred_fallthru
    _
  // Predicated region
  $region14: #{ccnn_generator.1} parent=0 // pred_check
    _
  $region15: #{ccnn_generator.1} parent=0 // pred_check_branch
    %29 = sbr.rel (0) target = $region17
  $region16: #{ccnn_generator.1} parent=0 // pred_region
    _
  $region17: #{ccnn_generator.1} parent=0 // pred_fallthru
    _
  // Predicated region
  $region18: #{ccnn_generator.1} parent=0 // pred_check
    _
  $region19: #{ccnn_generator.1} parent=0 // pred_check_branch
    %31 = sbr.rel (0) target = $region21
  $region20: #{ccnn_generator.1} parent=0 // pred_region
    _
  $region21: #{ccnn_generator.1} parent=0 // pred_fallthru
    _
  // Predicated region
  $region22: #{ccnn_generator.1} parent=0 // pred_check
    _
  $region23: #{ccnn_generator.1} parent=0 // pred_check_branch
    %33 = sbr.rel (0) target = $region25
  $region24: #{ccnn_generator.1} parent=0 // pred_region
    _
  $region25: #{ccnn_generator.1} parent=0 // pred_fallthru
    _
  // Predicated region
  $region26: #{ccnn_generator.1} parent=0 // pred_check
    _
  $region27: #{ccnn_generator.1} parent=0 // pred_check_branch
    %35 = sbr.rel (0) target = $region29
  $region28: #{ccnn_generator.1} parent=0 // pred_region
    _
  $region29: #{ccnn_generator.1} parent=0 // pred_fallthru
    _
  // Predicated region
  $region30: #{ccnn_generator.1} parent=0 // pred_check
    _
  $region31: #{ccnn_generator.1} parent=0 // pred_check_branch
    %37 = sbr.rel (0) target = $region33
  $region32: #{ccnn_generator.1} parent=0 // pred_region
    _
  $region33: #{ccnn_generator.1} parent=0 // pred_fallthru
    _
  // Predicated region
  $region34: #{ccnn_generator.1} parent=0 // pred_check
    _
  $region35: #{ccnn_generator.1} parent=0 // pred_check_branch
    %39 = sbr.rel (0) target = $region37
  $region36: #{ccnn_generator.1} parent=0 // pred_region
    _
  $region37: #{ccnn_generator.1} parent=0 // pred_fallthru
    _
  // Predicated region
  $region38: #{ccnn_generator.1} parent=0 // pred_check
    _
  $region39: #{ccnn_generator.1} parent=0 // pred_check_branch
    %41 = sbr.rel (0) target = $region41
  $region40: #{ccnn_generator.1} parent=0 // pred_region
    _
  $region41: #{ccnn_generator.1} parent=0 // pred_fallthru
    _
  // Predicated region
  $region42: #{ccnn_generator.1} parent=0 // pred_check
    _
  $region43: #{ccnn_generator.1} parent=0 // pred_check_branch
    %43 = sbr.rel (0) target = $region45
  $region44: #{ccnn_generator.1} parent=0 // pred_region
    _
  $region45: #{ccnn_generator.1} parent=0 // pred_fallthru
    _
  // Predicated region
  $region46: #{ccnn_generator.1} parent=0 // pred_check
    _
  $region47: #{ccnn_generator.1} parent=0 // pred_check_branch
    %45 = sbr.rel (0) target = $region49
  $region48: #{ccnn_generator.1} parent=0 // pred_region
    _
  $region49: #{ccnn_generator.1} parent=0 // pred_fallthru
    _
  // Predicated region
  $region50: #{ccnn_generator.1} parent=0 // pred_check
    _
  $region51: #{ccnn_generator.1} parent=0 // pred_check_branch
    %47 = sbr.rel (0) target = $region53
  $region52: #{ccnn_generator.1} parent=0 // pred_region
    _
  $region53: #{ccnn_generator.1} parent=0 // pred_fallthru
    _
  // Predicated region
  $region54: #{ccnn_generator.1} parent=0 // pred_check
    _
  $region55: #{ccnn_generator.1} parent=0 // pred_check_branch
    %49 = sbr.rel (0) target = $region57
  $region56: #{ccnn_generator.1} parent=0 // pred_region
    _
  $region57: #{ccnn_generator.1} parent=0 // pred_fallthru
    _
  // Predicated region
  $region58: #{ccnn_generator.1} parent=0 // pred_check
    _
  $region59: #{ccnn_generator.1} parent=0 // pred_check_branch
    %51 = sbr.rel (0) target = $region61
  $region60: #{ccnn_generator.1} parent=0 // pred_region
    _
  $region61: #{ccnn_generator.1} parent=0 // pred_fallthru
    _
  // Predicated region
  $region62: #{ccnn_generator.1} parent=0 // pred_check
    _
  $region63: #{ccnn_generator.1} parent=0 // pred_check_branch
    %53 = sbr.rel (0) target = $region65
  $region64: #{ccnn_generator.1} parent=0 // pred_region
    _
  $region65: #{ccnn_generator.1} parent=0 // pred_fallthru
    _
  // Predicated region
  $region66: #{ccnn_generator.1} parent=0 // pred_check
    _
  $region67: #{ccnn_generator.1} parent=0 // pred_check_branch
    %55 = sbr.rel (0) target = $region69
  $region68: #{ccnn_generator.1} parent=0 // pred_region
    _
  $region69: #{ccnn_generator.1} parent=0 // pred_fallthru
    _
  %v56 = vld [vmem:[%s0] sm:$0x3]
  %v57 = vld [vmem:[%s1] sm:$0x3f]
  %vm58 = vcmask 48128
  %v60 = vsel %vm58, %v56, 0
  %vm62 = vcmask 1045504
  %v64 = vsel %vm62, %v57, 0
  %66 = vmatprep.subr.mxu0 0.0
  %67 = vmatpush1.msra.mxu0 0.0
  %68 = vmatprep.subr.mxu0 0.0
  %69 = vmatpush1.msra.mxu0 0.0
  %70 = vmatprep.subr.mxu0 0.0
  %71 = vmatpush1.msra.mxu0 0.0
  %72 = vmatprep.subr.mxu0 0.0
  %73 = vmatpush1.msra.mxu0 0.0
  %74 = vmatprep.subr.mxu0 0.0
  %75 = vmatpush1.msra.mxu0 0.0
  %76 = vmatprep.subr.mxu0 0.0
  %77 = vmatpush1.msra.mxu0 0.0
  %78 = vmatprep.subr.mxu0 0.0
  %79 = vmatpush1.msra.mxu0 0.0
  %80 = vmatprep.subr.mxu0 0.0
  %81 = vmatpush1.msra.mxu0 0.0
  %82 = vmatprep.subr.mxu0 0.0
  %83 = vmatpush1.msra.mxu0 0.0
  %84 = vmatprep.subr.mxu0 0.0
  %85 = vmatpush1.msra.mxu0 0.0
  %86 = vmatprep.subr.mxu0 0.0
  %87 = vmatpush1.msra.mxu0 0.0
  %88 = vmatprep.subr.mxu0 0.0
  %89 = vmatpush1.msra.mxu0 0.0
  %90 = vmatprep.subr.mxu0 0.0
  %91 = vmatpush1.msra.mxu0 0.0
  %92 = vmatprep.subr.mxu0 0.0
  %93 = vmatpush1.msra.mxu0 0.0
  %94 = vmatprep.subr.mxu0 0.0
  %95 = vmatpush1.msra.mxu0 0.0
  %96 = vmatprep.subr.mxu0 0.0
  %97 = vmatpush1.msra.mxu0 %v64
  %98 = vmatprep.subr.mxu0 0.0
  %99 = vmatpush2.msra.mxu0 0.0
  %100 = vmatprep.subr.mxu0 0.0
  %101 = vmatpush2.msra.mxu0 0.0
  %102 = vmatprep.subr.mxu0 0.0
  %103 = vmatpush2.msra.mxu0 0.0
  %104 = vmatprep.subr.mxu0 0.0
  %105 = vmatpush2.msra.mxu0 0.0
  %106 = vmatprep.subr.mxu0 0.0
  %107 = vmatpush2.msra.mxu0 0.0
  %108 = vmatprep.subr.mxu0 0.0
  %109 = vmatpush2.msra.mxu0 0.0
  %110 = vmatprep.subr.mxu0 0.0
  %111 = vmatpush2.msra.mxu0 0.0
  %112 = vmatprep.subr.mxu0 0.0
  %113 = vmatpush2.msra.mxu0 0.0
  %114 = vmatprep.subr.mxu0 0.0
  %115 = vmatpush2.msra.mxu0 0.0
  %116 = vmatprep.subr.mxu0 0.0
  %117 = vmatpush2.msra.mxu0 0.0
  %118 = vmatprep.subr.mxu0 0.0
  %119 = vmatpush2.msra.mxu0 0.0
  %120 = vmatprep.subr.mxu0 0.0
  %121 = vmatpush2.msra.mxu0 0.0
  %122 = vmatprep.subr.mxu0 0.0
  %123 = vmatpush2.msra.mxu0 0.0
  %124 = vmatprep.subr.mxu0 0.0
  %125 = vmatpush2.msra.mxu0 0.0
  %126 = vmatprep.subr.mxu0 0.0
  %127 = vmatpush2.msra.mxu0 0.0
  %128 = vmatprep.subr.mxu0 0.0
  %129 = vmatpush2.msra.mxu0 0.0
  %130 = vmatprep.mubr.f32.mxu0 0.0
  %131 = vmatmul.mubr.f32.gmra.mxu0 %v60
  %v132 = vpop.f32.mrf.mxu0
  %v133 = vadd.f32 0.0, %v132
  %v134 = vpop.f32.mrf.mxu0
  %135 = vdwg.mxu0
  %v136 = vld [vmem:[%s2] sm:$0xff]
  %v137 = vld [vmem:[%s2 + $0x8] sm:$0xff]
  %v138 = vld [vmem:[%s2 + $0x10] sm:$0xff]
  %v139 = vld [vmem:[%s2 + $0x18] sm:$0xff]
  %v140 = vld [vmem:[%s2 + $0x20] sm:$0xff]
  %v141 = vld [vmem:[%s2 + $0x28] sm:$0xff]
  %v142 = vld [vmem:[%s3] sm:$0xff]
  %v143 = vld [vmem:[%s3 + $0x8] sm:$0xff]
  %v144 = vld [vmem:[%s3 + $0x10] sm:$0xff]
  %v145 = vld [vmem:[%s4] sm:$0x1]
  %v146 = vld [vmem:[%s5] sm:$0x1]
  %vm147 = vcmask 392192
  %v149 = vsel %vm147, %v133, 0
  %151 = vmatprep.subr.mxu0 0.0
  %152 = vmatpush1.msra.mxu0 0.0
  %153 = vmatprep.subr.mxu0 0.0
  %154 = vmatpush1.msra.mxu0 0.0
  %155 = vmatprep.subr.mxu0 0.0
  %156 = vmatpush1.msra.mxu0 0.0
  %157 = vmatprep.subr.mxu0 0.0
  %158 = vmatpush1.msra.mxu0 0.0
  %159 = vmatprep.subr.mxu0 0.0
  %160 = vmatpush1.msra.mxu0 0.0
  %161 = vmatprep.subr.mxu0 0.0
  %162 = vmatpush1.msra.mxu0 0.0
  %163 = vmatprep.subr.mxu0 0.0
  %164 = vmatpush1.msra.mxu0 0.0
  %165 = vmatprep.subr.mxu0 0.0
  %166 = vmatpush1.msra.mxu0 0.0
  %167 = vmatprep.subr.mxu0 0.0
  %168 = vmatpush1.msra.mxu0 0.0
  %169 = vmatprep.subr.mxu0 0.0
  %170 = vmatpush1.msra.mxu0 0.0
  %171 = vmatprep.subr.mxu0 0.0
  %172 = vmatpush1.msra.mxu0 %v141
  %173 = vmatprep.subr.mxu0 0.0
  %174 = vmatpush1.msra.mxu0 %v140
  %175 = vmatprep.subr.mxu0 0.0
  %176 = vmatpush1.msra.mxu0 %v139
  %177 = vmatprep.subr.mxu0 0.0
  %178 = vmatpush1.msra.mxu0 %v138
  %179 = vmatprep.subr.mxu0 0.0
  %180 = vmatpush1.msra.mxu0 %v137
  %181 = vmatprep.subr.mxu0 0.0
  %182 = vmatpush1.msra.mxu0 %v136
  %183 = vmatprep.subr.mxu0 0.0
  %184 = vmatpush2.msra.mxu0 0.0
  %185 = vmatprep.subr.mxu0 0.0
  %186 = vmatpush2.msra.mxu0 0.0
  %187 = vmatprep.subr.mxu0 0.0
  %188 = vmatpush2.msra.mxu0 0.0
  %189 = vmatprep.subr.mxu0 0.0
  %190 = vmatpush2.msra.mxu0 0.0
  %191 = vmatprep.subr.mxu0 0.0
  %192 = vmatpush2.msra.mxu0 0.0
  %193 = vmatprep.subr.mxu0 0.0
  %194 = vmatpush2.msra.mxu0 0.0
  %195 = vmatprep.subr.mxu0 0.0
  %196 = vmatpush2.msra.mxu0 0.0
  %197 = vmatprep.subr.mxu0 0.0
  %198 = vmatpush2.msra.mxu0 0.0
  %199 = vmatprep.subr.mxu0 0.0
  %200 = vmatpush2.msra.mxu0 0.0
  %201 = vmatprep.subr.mxu0 0.0
  %202 = vmatpush2.msra.mxu0 0.0
  %203 = vmatprep.subr.mxu0 0.0
  %204 = vmatpush2.msra.mxu0 0.0
  %205 = vmatprep.subr.mxu0 0.0
  %206 = vmatpush2.msra.mxu0 0.0
  %207 = vmatprep.subr.mxu0 0.0
  %208 = vmatpush2.msra.mxu0 0.0
  %209 = vmatprep.subr.mxu0 0.0
  %210 = vmatpush2.msra.mxu0 0.0
  %211 = vmatprep.subr.mxu0 0.0
  %212 = vmatpush2.msra.mxu0 0.0
  %213 = vmatprep.subr.mxu0 0.0
  %214 = vmatpush2.msra.mxu0 0.0
  %215 = vmatprep.mubr.f32.mxu0 0.0
  %216 = vmatmul.mubr.f32.gmra.mxu0 %v149
  %v217 = vpop.f32.mrf.mxu0
  %v218 = vadd.f32 0.0, %v217
  %v219 = vpop.f32.mrf.mxu0
  %220 = vdwg.mxu0
  %vm221 = vcmask 189440
  %v222 = vsel %vm221, %v218, 0.0
  %v223 = vrot.slane %v222, 4
  %v224 = vadd.f32 %v222, %v223
  %v225 = vrot.slane %v224, 2
  %v226 = vadd.f32 %v224, %v225
  %v227 = vrot.slane %v226, 1
  %v228 = vadd.f32 %v226, %v227
  %v229 = vmul.f32 %v228, 0.25
  %v230 = vmul.f32 %v133, %v133
  %v232 = vsel %vm147, %v230, 0
  %234 = vmatprep.subr.mxu0 0.0
  %235 = vmatpush1.msra.mxu0 0.0
  %236 = vmatprep.subr.mxu0 0.0
  %237 = vmatpush1.msra.mxu0 0.0
  %238 = vmatprep.subr.mxu0 0.0
  %239 = vmatpush1.msra.mxu0 0.0
  %240 = vmatprep.subr.mxu0 0.0
  %241 = vmatpush1.msra.mxu0 0.0
  %242 = vmatprep.subr.mxu0 0.0
  %243 = vmatpush1.msra.mxu0 0.0
  %244 = vmatprep.subr.mxu0 0.0
  %245 = vmatpush1.msra.mxu0 0.0
  %246 = vmatprep.subr.mxu0 0.0
  %247 = vmatpush1.msra.mxu0 0.0
  %248 = vmatprep.subr.mxu0 0.0
  %249 = vmatpush1.msra.mxu0 0.0
  %250 = vmatprep.subr.mxu0 0.0
  %251 = vmatpush1.msra.mxu0 0.0
  %252 = vmatprep.subr.mxu0 0.0
  %253 = vmatpush1.msra.mxu0 0.0
  %254 = vmatprep.subr.mxu0 0.0
  %255 = vmatpush1.msra.mxu0 %v141
  %256 = vmatprep.subr.mxu0 0.0
  %257 = vmatpush1.msra.mxu0 %v140
  %258 = vmatprep.subr.mxu0 0.0
  %259 = vmatpush1.msra.mxu0 %v139
  %260 = vmatprep.subr.mxu0 0.0
  %261 = vmatpush1.msra.mxu0 %v138
  %262 = vmatprep.subr.mxu0 0.0
  %263 = vmatpush1.msra.mxu0 %v137
  %264 = vmatprep.subr.mxu0 0.0
  %265 = vmatpush1.msra.mxu0 %v136
  %266 = vmatprep.subr.mxu0 0.0
  %267 = vmatpush2.msra.mxu0 0.0
  %268 = vmatprep.subr.mxu0 0.0
  %269 = vmatpush2.msra.mxu0 0.0
  %270 = vmatprep.subr.mxu0 0.0
  %271 = vmatpush2.msra.mxu0 0.0
  %272 = vmatprep.subr.mxu0 0.0
  %273 = vmatpush2.msra.mxu0 0.0
  %274 = vmatprep.subr.mxu0 0.0
  %275 = vmatpush2.msra.mxu0 0.0
  %276 = vmatprep.subr.mxu0 0.0
  %277 = vmatpush2.msra.mxu0 0.0
  %278 = vmatprep.subr.mxu0 0.0
  %279 = vmatpush2.msra.mxu0 0.0
  %280 = vmatprep.subr.mxu0 0.0
  %281 = vmatpush2.msra.mxu0 0.0
  %282 = vmatprep.subr.mxu0 0.0
  %283 = vmatpush2.msra.mxu0 0.0
  %284 = vmatprep.subr.mxu0 0.0
  %285 = vmatpush2.msra.mxu0 0.0
  %286 = vmatprep.subr.mxu0 0.0
  %287 = vmatpush2.msra.mxu0 0.0
  %288 = vmatprep.subr.mxu0 0.0
  %289 = vmatpush2.msra.mxu0 0.0
  %290 = vmatprep.subr.mxu0 0.0
  %291 = vmatpush2.msra.mxu0 0.0
  %292 = vmatprep.subr.mxu0 0.0
  %293 = vmatpush2.msra.mxu0 0.0
  %294 = vmatprep.subr.mxu0 0.0
  %295 = vmatpush2.msra.mxu0 0.0
  %296 = vmatprep.subr.mxu0 0.0
  %297 = vmatpush2.msra.mxu0 0.0
  %298 = vmatprep.mubr.f32.mxu0 0.0
  %299 = vmatmul.mubr.f32.gmra.mxu0 %v232
  %v300 = vpop.f32.mrf.mxu0
  %v301 = vadd.f32 0.0, %v300
  %v302 = vpop.f32.mrf.mxu0
  %303 = vdwg.mxu0
  %v304 = vsel %vm221, %v301, 0.0
  %v305 = vrot.slane %v304, 4
  %v306 = vadd.f32 %v304, %v305
  %v307 = vrot.slane %v306, 2
  %v308 = vadd.f32 %v306, %v307
  %v309 = vrot.slane %v308, 1
  %v310 = vadd.f32 %v308, %v309
  %v311 = vmul.f32 %v310, 0.25
  %v312 = vmul.f32 %v229, %v229
  %v313 = vsub.f32 %v311, %v312
  %v314 = vadd.f32 %v313, 1e-05
  %v315 = vrsqrt.pop %v314
  %v316 = vmul.f32 %v145, %v315
  %v317 = vmul.f32 %v229, %v316
  %v318 = vsub.f32 %v146, %v317
  %vm319 = vcmask 195584
  %v321 = vsel %vm319, %v316, 0
  %323 = vmatprep.subr.mxu0 0.0
  %324 = vmatpush1.msra.mxu0 0.0
  %325 = vmatprep.subr.mxu0 0.0
  %326 = vmatpush1.msra.mxu0 0.0
  %327 = vmatprep.subr.mxu0 0.0
  %328 = vmatpush1.msra.mxu0 0.0
  %329 = vmatprep.subr.mxu0 0.0
  %330 = vmatpush1.msra.mxu0 0.0
  %331 = vmatprep.subr.mxu0 0.0
  %332 = vmatpush1.msra.mxu0 0.0
  %333 = vmatprep.subr.mxu0 0.0
  %334 = vmatpush1.msra.mxu0 0.0
  %335 = vmatprep.subr.mxu0 0.0
  %336 = vmatpush1.msra.mxu0 0.0
  %337 = vmatprep.subr.mxu0 0.0
  %338 = vmatpush1.msra.mxu0 0.0
  %339 = vmatprep.subr.mxu0 0.0
  %340 = vmatpush1.msra.mxu0 0.0
  %341 = vmatprep.subr.mxu0 0.0
  %342 = vmatpush1.msra.mxu0 0.0
  %343 = vmatprep.subr.mxu0 0.0
  %344 = vmatpush1.msra.mxu0 0.0
  %345 = vmatprep.subr.mxu0 0.0
  %346 = vmatpush1.msra.mxu0 0.0
  %347 = vmatprep.subr.mxu0 0.0
  %348 = vmatpush1.msra.mxu0 0.0
  %349 = vmatprep.subr.mxu0 0.0
  %350 = vmatpush1.msra.mxu0 %v144
  %351 = vmatprep.subr.mxu0 0.0
  %352 = vmatpush1.msra.mxu0 %v143
  %353 = vmatprep.subr.mxu0 0.0
  %354 = vmatpush1.msra.mxu0 %v142
  %355 = vmatprep.subr.mxu0 0.0
  %356 = vmatpush2.msra.mxu0 0.0
  %357 = vmatprep.subr.mxu0 0.0
  %358 = vmatpush2.msra.mxu0 0.0
  %359 = vmatprep.subr.mxu0 0.0
  %360 = vmatpush2.msra.mxu0 0.0
  %361 = vmatprep.subr.mxu0 0.0
  %362 = vmatpush2.msra.mxu0 0.0
  %363 = vmatprep.subr.mxu0 0.0
  %364 = vmatpush2.msra.mxu0 0.0
  %365 = vmatprep.subr.mxu0 0.0
  %366 = vmatpush2.msra.mxu0 0.0
  %367 = vmatprep.subr.mxu0 0.0
  %368 = vmatpush2.msra.mxu0 0.0
  %369 = vmatprep.subr.mxu0 0.0
  %370 = vmatpush2.msra.mxu0 0.0
  %371 = vmatprep.subr.mxu0 0.0
  %372 = vmatpush2.msra.mxu0 0.0
  %373 = vmatprep.subr.mxu0 0.0
  %374 = vmatpush2.msra.mxu0 0.0
  %375 = vmatprep.subr.mxu0 0.0
  %376 = vmatpush2.msra.mxu0 0.0
  %377 = vmatprep.subr.mxu0 0.0
  %378 = vmatpush2.msra.mxu0 0.0
  %379 = vmatprep.subr.mxu0 0.0
  %380 = vmatpush2.msra.mxu0 0.0
  %381 = vmatprep.subr.mxu0 0.0
  %382 = vmatpush2.msra.mxu0 0.0
  %383 = vmatprep.subr.mxu0 0.0
  %384 = vmatpush2.msra.mxu0 0.0
  %385 = vmatprep.subr.mxu0 0.0
  %386 = vmatpush2.msra.mxu0 0.0
  %387 = vmatprep.mubr.f32.mxu0 0.0
  %388 = vmatmul.mubr.f32.gmra.mxu0 %v321
  %v389 = vpop.f32.mrf.mxu0
  %v390 = vadd.f32 0.0, %v389
  %v391 = vpop.f32.mrf.mxu0
  %392 = vdwg.mxu0
  %v394 = vsel %vm319, %v318, 0
  %396 = vmatprep.subr.mxu0 0.0
  %397 = vmatpush1.msra.mxu0 0.0
  %398 = vmatprep.subr.mxu0 0.0
  %399 = vmatpush1.msra.mxu0 0.0
  %400 = vmatprep.subr.mxu0 0.0
  %401 = vmatpush1.msra.mxu0 0.0
  %402 = vmatprep.subr.mxu0 0.0
  %403 = vmatpush1.msra.mxu0 0.0
  %404 = vmatprep.subr.mxu0 0.0
  %405 = vmatpush1.msra.mxu0 0.0
  %406 = vmatprep.subr.mxu0 0.0
  %407 = vmatpush1.msra.mxu0 0.0
  %408 = vmatprep.subr.mxu0 0.0
  %409 = vmatpush1.msra.mxu0 0.0
  %410 = vmatprep.subr.mxu0 0.0
  %411 = vmatpush1.msra.mxu0 0.0
  %412 = vmatprep.subr.mxu0 0.0
  %413 = vmatpush1.msra.mxu0 0.0
  %414 = vmatprep.subr.mxu0 0.0
  %415 = vmatpush1.msra.mxu0 0.0
  %416 = vmatprep.subr.mxu0 0.0
  %417 = vmatpush1.msra.mxu0 0.0
  %418 = vmatprep.subr.mxu0 0.0
  %419 = vmatpush1.msra.mxu0 0.0
  %420 = vmatprep.subr.mxu0 0.0
  %421 = vmatpush1.msra.mxu0 0.0
  %422 = vmatprep.subr.mxu0 0.0
  %423 = vmatpush1.msra.mxu0 %v144
  %424 = vmatprep.subr.mxu0 0.0
  %425 = vmatpush1.msra.mxu0 %v143
  %426 = vmatprep.subr.mxu0 0.0
  %427 = vmatpush1.msra.mxu0 %v142
  %428 = vmatprep.subr.mxu0 0.0
  %429 = vmatpush2.msra.mxu0 0.0
  %430 = vmatprep.subr.mxu0 0.0
  %431 = vmatpush2.msra.mxu0 0.0
  %432 = vmatprep.subr.mxu0 0.0
  %433 = vmatpush2.msra.mxu0 0.0
  %434 = vmatprep.subr.mxu0 0.0
  %435 = vmatpush2.msra.mxu0 0.0
  %436 = vmatprep.subr.mxu0 0.0
  %437 = vmatpush2.msra.mxu0 0.0
  %438 = vmatprep.subr.mxu0 0.0
  %439 = vmatpush2.msra.mxu0 0.0
  %440 = vmatprep.subr.mxu0 0.0
  %441 = vmatpush2.msra.mxu0 0.0
  %442 = vmatprep.subr.mxu0 0.0
  %443 = vmatpush2.msra.mxu0 0.0
  %444 = vmatprep.subr.mxu0 0.0
  %445 = vmatpush2.msra.mxu0 0.0
  %446 = vmatprep.subr.mxu0 0.0
  %447 = vmatpush2.msra.mxu0 0.0
  %448 = vmatprep.subr.mxu0 0.0
  %449 = vmatpush2.msra.mxu0 0.0
  %450 = vmatprep.subr.mxu0 0.0
  %451 = vmatpush2.msra.mxu0 0.0
  %452 = vmatprep.subr.mxu0 0.0
  %453 = vmatpush2.msra.mxu0 0.0
  %454 = vmatprep.subr.mxu0 0.0
  %455 = vmatpush2.msra.mxu0 0.0
  %456 = vmatprep.subr.mxu0 0.0
  %457 = vmatpush2.msra.mxu0 0.0
  %458 = vmatprep.subr.mxu0 0.0
  %459 = vmatpush2.msra.mxu0 0.0
  %460 = vmatprep.mubr.f32.mxu0 0.0
  %461 = vmatmul.mubr.f32.gmra.mxu0 %v394
  %v462 = vpop.f32.mrf.mxu0
  %v463 = vadd.f32 0.0, %v462
  %v464 = vpop.f32.mrf.mxu0
  %465 = vdwg.mxu0
  %v466 = vlaneseq
  %v467 = vshrl.u32 %v466, 7
  %v468 = vsub.s32 0, %v467
  %v469 = vrot.slane %v390, %v468
  %v470 = vmul.f32 %v133, %v469
  %v471 = vlaneseq
  %v472 = vshrl.u32 %v471, 7
  %v473 = vsub.s32 0, %v472
  %v474 = vrot.slane %v463, %v473
  %v475 = vadd.f32 %v470, %v474
  %vm476 = vcmp.ge.f32.partialorder %v475, 0.0
  %v477 = vmul.f32 %v475, 0.2
  %v478 = vsel %vm476, %v475, %v477
  %v479 = vld [vmem:[%s6] sm:$0xff]
  %v480 = vld [vmem:[%s6 + $0x8] sm:$0xff]
  %v481 = vld [vmem:[%s6 + $0x10] sm:$0xff]
  %v482 = vld [vmem:[%s6 + $0x18] sm:$0xff]
  %v483 = vld [vmem:[%s6 + $0x20] sm:$0xff]
  %v484 = vld [vmem:[%s6 + $0x28] sm:$0xff]
  %v486 = vsel %vm147, %v478, 0
  %488 = vmatprep.subr.mxu0 0.0
  %489 = vmatpush1.msra.mxu0 0.0
  %490 = vmatprep.subr.mxu0 0.0
  %491 = vmatpush1.msra.mxu0 0.0
  %492 = vmatprep.subr.mxu0 0.0
  %493 = vmatpush1.msra.mxu0 0.0
  %494 = vmatprep.subr.mxu0 0.0
  %495 = vmatpush1.msra.mxu0 0.0
  %496 = vmatprep.subr.mxu0 0.0
  %497 = vmatpush1.msra.mxu0 0.0
  %498 = vmatprep.subr.mxu0 0.0
  %499 = vmatpush1.msra.mxu0 0.0
  %500 = vmatprep.subr.mxu0 0.0
  %501 = vmatpush1.msra.mxu0 0.0
  %502 = vmatprep.subr.mxu0 0.0
  %503 = vmatpush1.msra.mxu0 0.0
  %504 = vmatprep.subr.mxu0 0.0
  %505 = vmatpush1.msra.mxu0 0.0
  %506 = vmatprep.subr.mxu0 0.0
  %507 = vmatpush1.msra.mxu0 0.0
  %508 = vmatprep.subr.mxu0 0.0
  %509 = vmatpush1.msra.mxu0 %v484
  %510 = vmatprep.subr.mxu0 0.0
  %511 = vmatpush1.msra.mxu0 %v483
  %512 = vmatprep.subr.mxu0 0.0
  %513 = vmatpush1.msra.mxu0 %v482
  %514 = vmatprep.subr.mxu0 0.0
  %515 = vmatpush1.msra.mxu0 %v481
  %516 = vmatprep.subr.mxu0 0.0
  %517 = vmatpush1.msra.mxu0 %v480
  %518 = vmatprep.subr.mxu0 0.0
  %519 = vmatpush1.msra.mxu0 %v479
  %520 = vmatprep.subr.mxu0 0.0
  %521 = vmatpush2.msra.mxu0 0.0
  %522 = vmatprep.subr.mxu0 0.0
  %523 = vmatpush2.msra.mxu0 0.0
  %524 = vmatprep.subr.mxu0 0.0
  %525 = vmatpush2.msra.mxu0 0.0
  %526 = vmatprep.subr.mxu0 0.0
  %527 = vmatpush2.msra.mxu0 0.0
  %528 = vmatprep.subr.mxu0 0.0
  %529 = vmatpush2.msra.mxu0 0.0
  %530 = vmatprep.subr.mxu0 0.0
  %531 = vmatpush2.msra.mxu0 0.0
  %532 = vmatprep.subr.mxu0 0.0
  %533 = vmatpush2.msra.mxu0 0.0
  %534 = vmatprep.subr.mxu0 0.0
  %535 = vmatpush2.msra.mxu0 0.0
  %536 = vmatprep.subr.mxu0 0.0
  %537 = vmatpush2.msra.mxu0 0.0
  %538 = vmatprep.subr.mxu0 0.0
  %539 = vmatpush2.msra.mxu0 0.0
  %540 = vmatprep.subr.mxu0 0.0
  %541 = vmatpush2.msra.mxu0 0.0
  %542 = vmatprep.subr.mxu0 0.0
  %543 = vmatpush2.msra.mxu0 0.0
  %544 = vmatprep.subr.mxu0 0.0
  %545 = vmatpush2.msra.mxu0 0.0
  %546 = vmatprep.subr.mxu0 0.0
  %547 = vmatpush2.msra.mxu0 0.0
  %548 = vmatprep.subr.mxu0 0.0
  %549 = vmatpush2.msra.mxu0 0.0
  %550 = vmatprep.subr.mxu0 0.0
  %551 = vmatpush2.msra.mxu0 0.0
  %552 = vmatprep.mubr.f32.mxu0 0.0
  %553 = vmatmul.mubr.f32.gmra.mxu0 %v486
  %v554 = vpop.f32.mrf.mxu0
  %v555 = vadd.f32 0.0, %v554
  %v556 = vpop.f32.mrf.mxu0
  %557 = vdwg.mxu0
  %v558 = vld [vmem:[%s7] sm:$0xff]
  %v559 = vld [vmem:[%s7 + $0x8] sm:$0xff]
  %v560 = vld [vmem:[%s7 + $0x10] sm:$0xff]
  %v561 = vld [vmem:[%s7 + $0x18] sm:$0xff]
  %v562 = vld [vmem:[%s7 + $0x20] sm:$0xff]
  %v563 = vld [vmem:[%s7 + $0x28] sm:$0xff]
  %v564 = vld [vmem:[%s7 + $0x30] sm:$0xff]
  %v565 = vld [vmem:[%s7 + $0x38] sm:$0xf]
  %v566 = vld [vmem:[%s8] sm:$0xff]
  %v567 = vld [vmem:[%s8 + $0x8] sm:$0xf]
  %v568 = vld [vmem:[%s9] sm:$0x1]
  %v569 = vld [vmem:[%s10] sm:$0x1]
  %vm570 = vcmask 490496
  %v572 = vsel %vm570, %v555, 0
  %vm574 = vcmask 1043456
  %v576 = vsel %vm574, %v565, 0
  %578 = vmatprep.subr.mxu0 0.0
  %579 = vmatpush1.msra.mxu0 0.0
  %580 = vmatprep.subr.mxu0 0.0
  %581 = vmatpush1.msra.mxu0 0.0
  %582 = vmatprep.subr.mxu0 0.0
  %583 = vmatpush1.msra.mxu0 0.0
  %584 = vmatprep.subr.mxu0 0.0
  %585 = vmatpush1.msra.mxu0 0.0
  %586 = vmatprep.subr.mxu0 0.0
  %587 = vmatpush1.msra.mxu0 0.0
  %588 = vmatprep.subr.mxu0 0.0
  %589 = vmatpush1.msra.mxu0 0.0
  %590 = vmatprep.subr.mxu0 0.0
  %591 = vmatpush1.msra.mxu0 0.0
  %592 = vmatprep.subr.mxu0 0.0
  %593 = vmatpush1.msra.mxu0 0.0
  %594 = vmatprep.subr.mxu0 0.0
  %595 = vmatpush1.msra.mxu0 %v576
  %596 = vmatprep.subr.mxu0 0.0
  %597 = vmatpush1.msra.mxu0 %v564
  %598 = vmatprep.subr.mxu0 0.0
  %599 = vmatpush1.msra.mxu0 %v563
  %600 = vmatprep.subr.mxu0 0.0
  %601 = vmatpush1.msra.mxu0 %v562
  %602 = vmatprep.subr.mxu0 0.0
  %603 = vmatpush1.msra.mxu0 %v561
  %604 = vmatprep.subr.mxu0 0.0
  %605 = vmatpush1.msra.mxu0 %v560
  %606 = vmatprep.subr.mxu0 0.0
  %607 = vmatpush1.msra.mxu0 %v559
  %608 = vmatprep.subr.mxu0 0.0
  %609 = vmatpush1.msra.mxu0 %v558
  %610 = vmatprep.subr.mxu0 0.0
  %611 = vmatpush2.msra.mxu0 0.0
  %612 = vmatprep.subr.mxu0 0.0
  %613 = vmatpush2.msra.mxu0 0.0
  %614 = vmatprep.subr.mxu0 0.0
  %615 = vmatpush2.msra.mxu0 0.0
  %616 = vmatprep.subr.mxu0 0.0
  %617 = vmatpush2.msra.mxu0 0.0
  %618 = vmatprep.subr.mxu0 0.0
  %619 = vmatpush2.msra.mxu0 0.0
  %620 = vmatprep.subr.mxu0 0.0
  %621 = vmatpush2.msra.mxu0 0.0
  %622 = vmatprep.subr.mxu0 0.0
  %623 = vmatpush2.msra.mxu0 0.0
  %624 = vmatprep.subr.mxu0 0.0
  %625 = vmatpush2.msra.mxu0 0.0
  %626 = vmatprep.subr.mxu0 0.0
  %627 = vmatpush2.msra.mxu0 0.0
  %628 = vmatprep.subr.mxu0 0.0
  %629 = vmatpush2.msra.mxu0 0.0
  %630 = vmatprep.subr.mxu0 0.0
  %631 = vmatpush2.msra.mxu0 0.0
  %632 = vmatprep.subr.mxu0 0.0
  %633 = vmatpush2.msra.mxu0 0.0
  %634 = vmatprep.subr.mxu0 0.0
  %635 = vmatpush2.msra.mxu0 0.0
  %636 = vmatprep.subr.mxu0 0.0
  %637 = vmatpush2.msra.mxu0 0.0
  %638 = vmatprep.subr.mxu0 0.0
  %639 = vmatpush2.msra.mxu0 0.0
  %640 = vmatprep.subr.mxu0 0.0
  %641 = vmatpush2.msra.mxu0 0.0
  %642 = vmatprep.mubr.f32.mxu0 0.0
  %643 = vmatmul.mubr.f32.gmra.mxu0 %v572
  %v644 = vpop.f32.mrf.mxu0
  %v645 = vadd.f32 0.0, %v644
  %v646 = vpop.f32.mrf.mxu0
  %647 = vdwg.mxu0
  %vm648 = vcmask 91136
  %v649 = vsel %vm648, %v645, 0.0
  %v650 = vrot.slane %v649, 4
  %v651 = vadd.f32 %v649, %v650
  %v652 = vrot.slane %v651, 2
  %v653 = vadd.f32 %v651, %v652
  %v654 = vrot.slane %v653, 1
  %v655 = vadd.f32 %v653, %v654
  %v656 = vmul.f32 %v655, 0.1
  %v657 = vmul.f32 %v555, %v555
  %v659 = vsel %vm570, %v657, 0
  %661 = vmatprep.subr.mxu0 0.0
  %662 = vmatpush1.msra.mxu0 0.0
  %663 = vmatprep.subr.mxu0 0.0
  %664 = vmatpush1.msra.mxu0 0.0
  %665 = vmatprep.subr.mxu0 0.0
  %666 = vmatpush1.msra.mxu0 0.0
  %667 = vmatprep.subr.mxu0 0.0
  %668 = vmatpush1.msra.mxu0 0.0
  %669 = vmatprep.subr.mxu0 0.0
  %670 = vmatpush1.msra.mxu0 0.0
  %671 = vmatprep.subr.mxu0 0.0
  %672 = vmatpush1.msra.mxu0 0.0
  %673 = vmatprep.subr.mxu0 0.0
  %674 = vmatpush1.msra.mxu0 0.0
  %675 = vmatprep.subr.mxu0 0.0
  %676 = vmatpush1.msra.mxu0 0.0
  %677 = vmatprep.subr.mxu0 0.0
  %678 = vmatpush1.msra.mxu0 %v576
  %679 = vmatprep.subr.mxu0 0.0
  %680 = vmatpush1.msra.mxu0 %v564
  %681 = vmatprep.subr.mxu0 0.0
  %682 = vmatpush1.msra.mxu0 %v563
  %683 = vmatprep.subr.mxu0 0.0
  %684 = vmatpush1.msra.mxu0 %v562
  %685 = vmatprep.subr.mxu0 0.0
  %686 = vmatpush1.msra.mxu0 %v561
  %687 = vmatprep.subr.mxu0 0.0
  %688 = vmatpush1.msra.mxu0 %v560
  %689 = vmatprep.subr.mxu0 0.0
  %690 = vmatpush1.msra.mxu0 %v559
  %691 = vmatprep.subr.mxu0 0.0
  %692 = vmatpush1.msra.mxu0 %v558
  %693 = vmatprep.subr.mxu0 0.0
  %694 = vmatpush2.msra.mxu0 0.0
  %695 = vmatprep.subr.mxu0 0.0
  %696 = vmatpush2.msra.mxu0 0.0
  %697 = vmatprep.subr.mxu0 0.0
  %698 = vmatpush2.msra.mxu0 0.0
  %699 = vmatprep.subr.mxu0 0.0
  %700 = vmatpush2.msra.mxu0 0.0
  %701 = vmatprep.subr.mxu0 0.0
  %702 = vmatpush2.msra.mxu0 0.0
  %703 = vmatprep.subr.mxu0 0.0
  %704 = vmatpush2.msra.mxu0 0.0
  %705 = vmatprep.subr.mxu0 0.0
  %706 = vmatpush2.msra.mxu0 0.0
  %707 = vmatprep.subr.mxu0 0.0
  %708 = vmatpush2.msra.mxu0 0.0
  %709 = vmatprep.subr.mxu0 0.0
  %710 = vmatpush2.msra.mxu0 0.0
  %711 = vmatprep.subr.mxu0 0.0
  %712 = vmatpush2.msra.mxu0 0.0
  %713 = vmatprep.subr.mxu0 0.0
  %714 = vmatpush2.msra.mxu0 0.0
  %715 = vmatprep.subr.mxu0 0.0
  %716 = vmatpush2.msra.mxu0 0.0
  %717 = vmatprep.subr.mxu0 0.0
  %718 = vmatpush2.msra.mxu0 0.0
  %719 = vmatprep.subr.mxu0 0.0
  %720 = vmatpush2.msra.mxu0 0.0
  %721 = vmatprep.subr.mxu0 0.0
  %722 = vmatpush2.msra.mxu0 0.0
  %723 = vmatprep.subr.mxu0 0.0
  %724 = vmatpush2.msra.mxu0 0.0
  %725 = vmatprep.mubr.f32.mxu0 0.0
  %726 = vmatmul.mubr.f32.gmra.mxu0 %v659
  %v727 = vpop.f32.mrf.mxu0
  %v728 = vadd.f32 0.0, %v727
  %v729 = vpop.f32.mrf.mxu0
  %730 = vdwg.mxu0
  %v731 = vsel %vm648, %v728, 0.0
  %v732 = vrot.slane %v731, 4
  %v733 = vadd.f32 %v731, %v732
  %v734 = vrot.slane %v733, 2
  %v735 = vadd.f32 %v733, %v734
  %v736 = vrot.slane %v735, 1
  %v737 = vadd.f32 %v735, %v736
  %v738 = vmul.f32 %v737, 0.1
  %v739 = vmul.f32 %v656, %v656
  %v740 = vsub.f32 %v738, %v739
  %v741 = vadd.f32 %v740, 1e-05
  %v742 = vrsqrt.pop %v741
  %v743 = vmul.f32 %v568, %v742
  %v744 = vmul.f32 %v656, %v743
  %v745 = vsub.f32 %v569, %v744
  %vm746 = vcmask 97280
  %v748 = vsel %vm746, %v743, 0
  %v751 = vsel %vm574, %v567, 0
  %753 = vmatprep.subr.mxu0 0.0
  %754 = vmatpush1.msra.mxu0 0.0
  %755 = vmatprep.subr.mxu0 0.0
  %756 = vmatpush1.msra.mxu0 0.0
  %757 = vmatprep.subr.mxu0 0.0
  %758 = vmatpush1.msra.mxu0 0.0
  %759 = vmatprep.subr.mxu0 0.0
  %760 = vmatpush1.msra.mxu0 0.0
  %761 = vmatprep.subr.mxu0 0.0
  %762 = vmatpush1.msra.mxu0 0.0
  %763 = vmatprep.subr.mxu0 0.0
  %764 = vmatpush1.msra.mxu0 0.0
  %765 = vmatprep.subr.mxu0 0.0
  %766 = vmatpush1.msra.mxu0 0.0
  %767 = vmatprep.subr.mxu0 0.0
  %768 = vmatpush1.msra.mxu0 0.0
  %769 = vmatprep.subr.mxu0 0.0
  %770 = vmatpush1.msra.mxu0 0.0
  %771 = vmatprep.subr.mxu0 0.0
  %772 = vmatpush1.msra.mxu0 0.0
  %773 = vmatprep.subr.mxu0 0.0
  %774 = vmatpush1.msra.mxu0 0.0
  %775 = vmatprep.subr.mxu0 0.0
  %776 = vmatpush1.msra.mxu0 0.0
  %777 = vmatprep.subr.mxu0 0.0
  %778 = vmatpush1.msra.mxu0 0.0
  %779 = vmatprep.subr.mxu0 0.0
  %780 = vmatpush1.msra.mxu0 0.0
  %781 = vmatprep.subr.mxu0 0.0
  %782 = vmatpush1.msra.mxu0 %v751
  %783 = vmatprep.subr.mxu0 0.0
  %784 = vmatpush1.msra.mxu0 %v566
  %785 = vmatprep.subr.mxu0 0.0
  %786 = vmatpush2.msra.mxu0 0.0
  %787 = vmatprep.subr.mxu0 0.0
  %788 = vmatpush2.msra.mxu0 0.0
  %789 = vmatprep.subr.mxu0 0.0
  %790 = vmatpush2.msra.mxu0 0.0
  %791 = vmatprep.subr.mxu0 0.0
  %792 = vmatpush2.msra.mxu0 0.0
  %793 = vmatprep.subr.mxu0 0.0
  %794 = vmatpush2.msra.mxu0 0.0
  %795 = vmatprep.subr.mxu0 0.0
  %796 = vmatpush2.msra.mxu0 0.0
  %797 = vmatprep.subr.mxu0 0.0
  %798 = vmatpush2.msra.mxu0 0.0
  %799 = vmatprep.subr.mxu0 0.0
  %800 = vmatpush2.msra.mxu0 0.0
  %801 = vmatprep.subr.mxu0 0.0
  %802 = vmatpush2.msra.mxu0 0.0
  %803 = vmatprep.subr.mxu0 0.0
  %804 = vmatpush2.msra.mxu0 0.0
  %805 = vmatprep.subr.mxu0 0.0
  %806 = vmatpush2.msra.mxu0 0.0
  %807 = vmatprep.subr.mxu0 0.0
  %808 = vmatpush2.msra.mxu0 0.0
  %809 = vmatprep.subr.mxu0 0.0
  %810 = vmatpush2.msra.mxu0 0.0
  %811 = vmatprep.subr.mxu0 0.0
  %812 = vmatpush2.msra.mxu0 0.0
  %813 = vmatprep.subr.mxu0 0.0
  %814 = vmatpush2.msra.mxu0 0.0
  %815 = vmatprep.subr.mxu0 0.0
  %816 = vmatpush2.msra.mxu0 0.0
  %817 = vmatprep.mubr.f32.mxu0 0.0
  %818 = vmatmul.mubr.f32.gmra.mxu0 %v748
  %v819 = vpop.f32.mrf.mxu0
  %v820 = vadd.f32 0.0, %v819
  %v821 = vpop.f32.mrf.mxu0
  %822 = vdwg.mxu0
  %v824 = vsel %vm746, %v745, 0
  %826 = vmatprep.subr.mxu0 0.0
  %827 = vmatpush1.msra.mxu0 0.0
  %828 = vmatprep.subr.mxu0 0.0
  %829 = vmatpush1.msra.mxu0 0.0
  %830 = vmatprep.subr.mxu0 0.0
  %831 = vmatpush1.msra.mxu0 0.0
  %832 = vmatprep.subr.mxu0 0.0
  %833 = vmatpush1.msra.mxu0 0.0
  %834 = vmatprep.subr.mxu0 0.0
  %835 = vmatpush1.msra.mxu0 0.0
  %836 = vmatprep.subr.mxu0 0.0
  %837 = vmatpush1.msra.mxu0 0.0
  %838 = vmatprep.subr.mxu0 0.0
  %839 = vmatpush1.msra.mxu0 0.0
  %840 = vmatprep.subr.mxu0 0.0
  %841 = vmatpush1.msra.mxu0 0.0
  %842 = vmatprep.subr.mxu0 0.0
  %843 = vmatpush1.msra.mxu0 0.0
  %844 = vmatprep.subr.mxu0 0.0
  %845 = vmatpush1.msra.mxu0 0.0
  %846 = vmatprep.subr.mxu0 0.0
  %847 = vmatpush1.msra.mxu0 0.0
  %848 = vmatprep.subr.mxu0 0.0
  %849 = vmatpush1.msra.mxu0 0.0
  %850 = vmatprep.subr.mxu0 0.0
  %851 = vmatpush1.msra.mxu0 0.0
  %852 = vmatprep.subr.mxu0 0.0
  %853 = vmatpush1.msra.mxu0 0.0
  %854 = vmatprep.subr.mxu0 0.0
  %855 = vmatpush1.msra.mxu0 %v751
  %856 = vmatprep.subr.mxu0 0.0
  %857 = vmatpush1.msra.mxu0 %v566
  %858 = vmatprep.subr.mxu0 0.0
  %859 = vmatpush2.msra.mxu0 0.0
  %860 = vmatprep.subr.mxu0 0.0
  %861 = vmatpush2.msra.mxu0 0.0
  %862 = vmatprep.subr.mxu0 0.0
  %863 = vmatpush2.msra.mxu0 0.0
  %864 = vmatprep.subr.mxu0 0.0
  %865 = vmatpush2.msra.mxu0 0.0
  %866 = vmatprep.subr.mxu0 0.0
  %867 = vmatpush2.msra.mxu0 0.0
  %868 = vmatprep.subr.mxu0 0.0
  %869 = vmatpush2.msra.mxu0 0.0
  %870 = vmatprep.subr.mxu0 0.0
  %871 = vmatpush2.msra.mxu0 0.0
  %872 = vmatprep.subr.mxu0 0.0
  %873 = vmatpush2.msra.mxu0 0.0
  %874 = vmatprep.subr.mxu0 0.0
  %875 = vmatpush2.msra.mxu0 0.0
  %876 = vmatprep.subr.mxu0 0.0
  %877 = vmatpush2.msra.mxu0 0.0
  %878 = vmatprep.subr.mxu0 0.0
  %879 = vmatpush2.msra.mxu0 0.0
  %880 = vmatprep.subr.mxu0 0.0
  %881 = vmatpush2.msra.mxu0 0.0
  %882 = vmatprep.subr.mxu0 0.0
  %883 = vmatpush2.msra.mxu0 0.0
  %884 = vmatprep.subr.mxu0 0.0
  %885 = vmatpush2.msra.mxu0 0.0
  %886 = vmatprep.subr.mxu0 0.0
  %887 = vmatpush2.msra.mxu0 0.0
  %888 = vmatprep.subr.mxu0 0.0
  %889 = vmatpush2.msra.mxu0 0.0
  %890 = vmatprep.mubr.f32.mxu0 0.0
  %891 = vmatmul.mubr.f32.gmra.mxu0 %v824
  %v892 = vpop.f32.mrf.mxu0
  %v893 = vadd.f32 0.0, %v892
  %v894 = vpop.f32.mrf.mxu0
  %895 = vdwg.mxu0
  %v896 = vlaneseq
  %v897 = vshrl.u32 %v896, 7
  %v898 = vsub.s32 0, %v897
  %v899 = vrot.slane %v820, %v898
  %v900 = vmul.f32 %v555, %v899
  %v901 = vlaneseq
  %v902 = vshrl.u32 %v901, 7
  %v903 = vsub.s32 0, %v902
  %v904 = vrot.slane %v893, %v903
  %v905 = vadd.f32 %v900, %v904
  %v906 = vmax.f32 %v905, 0.0
  %v907 = vld [vmem:[%s11] sm:$0xff]
  %v908 = vld [vmem:[%s11 + $0x8] sm:$0xff]
  %v909 = vld [vmem:[%s11 + $0x10] sm:$0xff]
  %v910 = vld [vmem:[%s11 + $0x18] sm:$0xff]
  %v911 = vld [vmem:[%s11 + $0x20] sm:$0xff]
  %v912 = vld [vmem:[%s11 + $0x28] sm:$0xff]
  %v913 = vld [vmem:[%s11 + $0x30] sm:$0xff]
  %v914 = vld [vmem:[%s11 + $0x38] sm:$0xf]
  %v916 = vsel %vm570, %v906, 0
  %v919 = vsel %vm574, %v914, 0
  %921 = vmatprep.subr.mxu0 0.0
  %922 = vmatpush1.msra.mxu0 0.0
  %923 = vmatprep.subr.mxu0 0.0
  %924 = vmatpush1.msra.mxu0 0.0
  %925 = vmatprep.subr.mxu0 0.0
  %926 = vmatpush1.msra.mxu0 0.0
  %927 = vmatprep.subr.mxu0 0.0
  %928 = vmatpush1.msra.mxu0 0.0
  %929 = vmatprep.subr.mxu0 0.0
  %930 = vmatpush1.msra.mxu0 0.0
  %931 = vmatprep.subr.mxu0 0.0
  %932 = vmatpush1.msra.mxu0 0.0
  %933 = vmatprep.subr.mxu0 0.0
  %934 = vmatpush1.msra.mxu0 0.0
  %935 = vmatprep.subr.mxu0 0.0
  %936 = vmatpush1.msra.mxu0 0.0
  %937 = vmatprep.subr.mxu0 0.0
  %938 = vmatpush1.msra.mxu0 %v919
  %939 = vmatprep.subr.mxu0 0.0
  %940 = vmatpush1.msra.mxu0 %v913
  %941 = vmatprep.subr.mxu0 0.0
  %942 = vmatpush1.msra.mxu0 %v912
  %943 = vmatprep.subr.mxu0 0.0
  %944 = vmatpush1.msra.mxu0 %v911
  %945 = vmatprep.subr.mxu0 0.0
  %946 = vmatpush1.msra.mxu0 %v910
  %947 = vmatprep.subr.mxu0 0.0
  %948 = vmatpush1.msra.mxu0 %v909
  %949 = vmatprep.subr.mxu0 0.0
  %950 = vmatpush1.msra.mxu0 %v908
  %951 = vmatprep.subr.mxu0 0.0
  %952 = vmatpush1.msra.mxu0 %v907
  %953 = vmatprep.subr.mxu0 0.0
  %954 = vmatpush2.msra.mxu0 0.0
  %955 = vmatprep.subr.mxu0 0.0
  %956 = vmatpush2.msra.mxu0 0.0
  %957 = vmatprep.subr.mxu0 0.0
  %958 = vmatpush2.msra.mxu0 0.0
  %959 = vmatprep.subr.mxu0 0.0
  %960 = vmatpush2.msra.mxu0 0.0
  %961 = vmatprep.subr.mxu0 0.0
  %962 = vmatpush2.msra.mxu0 0.0
  %963 = vmatprep.subr.mxu0 0.0
  %964 = vmatpush2.msra.mxu0 0.0
  %965 = vmatprep.subr.mxu0 0.0
  %966 = vmatpush2.msra.mxu0 0.0
  %967 = vmatprep.subr.mxu0 0.0
  %968 = vmatpush2.msra.mxu0 0.0
  %969 = vmatprep.subr.mxu0 0.0
  %970 = vmatpush2.msra.mxu0 0.0
  %971 = vmatprep.subr.mxu0 0.0
  %972 = vmatpush2.msra.mxu0 0.0
  %973 = vmatprep.subr.mxu0 0.0
  %974 = vmatpush2.msra.mxu0 0.0
  %975 = vmatprep.subr.mxu0 0.0
  %976 = vmatpush2.msra.mxu0 0.0
  %977 = vmatprep.subr.mxu0 0.0
  %978 = vmatpush2.msra.mxu0 0.0
  %979 = vmatprep.subr.mxu0 0.0
  %980 = vmatpush2.msra.mxu0 0.0
  %981 = vmatprep.subr.mxu0 0.0
  %982 = vmatpush2.msra.mxu0 0.0
  %983 = vmatprep.subr.mxu0 0.0
  %984 = vmatpush2.msra.mxu0 0.0
  %985 = vmatprep.mubr.f32.mxu0 0.0
  %986 = vmatmul.mubr.f32.gmra.mxu0 %v916
  %v987 = vpop.f32.mrf.mxu0
  %v988 = vadd.f32 0.0, %v987
  %v989 = vpop.f32.mrf.mxu0
  %990 = vdwg.mxu0
  %v991 = vld [vmem:[%s12] sm:$0xff]
  %v992 = vld [vmem:[%s12 + $0x8] sm:$0xff]
  %v993 = vld [vmem:[%s12 + $0x10] sm:$0xff]
  %v994 = vld [vmem:[%s12 + $0x18] sm:$0xff]
  %v995 = vld [vmem:[%s12 + $0x20] sm:$0xff]
  %v996 = vld [vmem:[%s12 + $0x28] sm:$0xff]
  %v997 = vld [vmem:[%s12 + $0x30] sm:$0xff]
  %v998 = vld [vmem:[%s12 + $0x38] sm:$0xff]
  %v999 = vld [vmem:[%s12 + $0x40] sm:$0xff]
  %v1000 = vld [vmem:[%s13] sm:$0x3f]
  %v1001 = vld [vmem:[%s14] sm:$0x1]
  %v1002 = vld [vmem:[%s15] sm:$0x1]
  %vm1003 = vcmask 588800
  %v1005 = vsel %vm1003, %v988, 0
  %1007 = vmatprep.subr.mxu0 0.0
  %1008 = vmatpush1.msra.mxu0 0.0
  %1009 = vmatprep.subr.mxu0 0.0
  %1010 = vmatpush1.msra.mxu0 0.0
  %1011 = vmatprep.subr.mxu0 0.0
  %1012 = vmatpush1.msra.mxu0 0.0
  %1013 = vmatprep.subr.mxu0 0.0
  %1014 = vmatpush1.msra.mxu0 0.0
  %1015 = vmatprep.subr.mxu0 0.0
  %1016 = vmatpush1.msra.mxu0 0.0
  %1017 = vmatprep.subr.mxu0 0.0
  %1018 = vmatpush1.msra.mxu0 0.0
  %1019 = vmatprep.subr.mxu0 0.0
  %1020 = vmatpush1.msra.mxu0 0.0
  %1021 = vmatprep.subr.mxu0 0.0
  %1022 = vmatpush1.msra.mxu0 %v999
  %1023 = vmatprep.subr.mxu0 0.0
  %1024 = vmatpush1.msra.mxu0 %v998
  %1025 = vmatprep.subr.mxu0 0.0
  %1026 = vmatpush1.msra.mxu0 %v997
  %1027 = vmatprep.subr.mxu0 0.0
  %1028 = vmatpush1.msra.mxu0 %v996
  %1029 = vmatprep.subr.mxu0 0.0
  %1030 = vmatpush1.msra.mxu0 %v995
  %1031 = vmatprep.subr.mxu0 0.0
  %1032 = vmatpush1.msra.mxu0 %v994
  %1033 = vmatprep.subr.mxu0 0.0
  %1034 = vmatpush1.msra.mxu0 %v993
  %1035 = vmatprep.subr.mxu0 0.0
  %1036 = vmatpush1.msra.mxu0 %v992
  %1037 = vmatprep.subr.mxu0 0.0
  %1038 = vmatpush1.msra.mxu0 %v991
  %1039 = vmatprep.subr.mxu0 0.0
  %1040 = vmatpush2.msra.mxu0 0.0
  %1041 = vmatprep.subr.mxu0 0.0
  %1042 = vmatpush2.msra.mxu0 0.0
  %1043 = vmatprep.subr.mxu0 0.0
  %1044 = vmatpush2.msra.mxu0 0.0
  %1045 = vmatprep.subr.mxu0 0.0
  %1046 = vmatpush2.msra.mxu0 0.0
  %1047 = vmatprep.subr.mxu0 0.0
  %1048 = vmatpush2.msra.mxu0 0.0
  %1049 = vmatprep.subr.mxu0 0.0
  %1050 = vmatpush2.msra.mxu0 0.0
  %1051 = vmatprep.subr.mxu0 0.0
  %1052 = vmatpush2.msra.mxu0 0.0
  %1053 = vmatprep.subr.mxu0 0.0
  %1054 = vmatpush2.msra.mxu0 0.0
  %1055 = vmatprep.subr.mxu0 0.0
  %1056 = vmatpush2.msra.mxu0 0.0
  %1057 = vmatprep.subr.mxu0 0.0
  %1058 = vmatpush2.msra.mxu0 0.0
  %1059 = vmatprep.subr.mxu0 0.0
  %1060 = vmatpush2.msra.mxu0 0.0
  %1061 = vmatprep.subr.mxu0 0.0
  %1062 = vmatpush2.msra.mxu0 0.0
  %1063 = vmatprep.subr.mxu0 0.0
  %1064 = vmatpush2.msra.mxu0 0.0
  %1065 = vmatprep.subr.mxu0 0.0
  %1066 = vmatpush2.msra.mxu0 0.0
  %1067 = vmatprep.subr.mxu0 0.0
  %1068 = vmatpush2.msra.mxu0 0.0
  %1069 = vmatprep.subr.mxu0 0.0
  %1070 = vmatpush2.msra.mxu0 0.0
  %1071 = vmatprep.mubr.f32.mxu0 0.0
  %1072 = vmatmul.mubr.f32.gmra.mxu0 %v1005
  %v1073 = vpop.f32.mrf.mxu0
  %v1074 = vadd.f32 0.0, %v1073
  %v1075 = vpop.f32.mrf.mxu0
  %1076 = vdwg.mxu0
  %vm1077 = vcmask 41984
  %v1078 = vsel %vm1077, %v1074, 0.0
  %v1079 = vrot.slane %v1078, 4
  %v1080 = vadd.f32 %v1078, %v1079
  %v1081 = vrot.slane %v1080, 2
  %v1082 = vadd.f32 %v1080, %v1081
  %v1083 = vrot.slane %v1082, 1
  %v1084 = vadd.f32 %v1082, %v1083
  %v1085 = vmul.f32 %v1084, 0.041666668
  %v1086 = vmul.f32 %v988, %v988
  %v1088 = vsel %vm1003, %v1086, 0
  %1090 = vmatprep.subr.mxu0 0.0
  %1091 = vmatpush1.msra.mxu0 0.0
  %1092 = vmatprep.subr.mxu0 0.0
  %1093 = vmatpush1.msra.mxu0 0.0
  %1094 = vmatprep.subr.mxu0 0.0
  %1095 = vmatpush1.msra.mxu0 0.0
  %1096 = vmatprep.subr.mxu0 0.0
  %1097 = vmatpush1.msra.mxu0 0.0
  %1098 = vmatprep.subr.mxu0 0.0
  %1099 = vmatpush1.msra.mxu0 0.0
  %1100 = vmatprep.subr.mxu0 0.0
  %1101 = vmatpush1.msra.mxu0 0.0
  %1102 = vmatprep.subr.mxu0 0.0
  %1103 = vmatpush1.msra.mxu0 0.0
  %1104 = vmatprep.subr.mxu0 0.0
  %1105 = vmatpush1.msra.mxu0 %v999
  %1106 = vmatprep.subr.mxu0 0.0
  %1107 = vmatpush1.msra.mxu0 %v998
  %1108 = vmatprep.subr.mxu0 0.0
  %1109 = vmatpush1.msra.mxu0 %v997
  %1110 = vmatprep.subr.mxu0 0.0
  %1111 = vmatpush1.msra.mxu0 %v996
  %1112 = vmatprep.subr.mxu0 0.0
  %1113 = vmatpush1.msra.mxu0 %v995
  %1114 = vmatprep.subr.mxu0 0.0
  %1115 = vmatpush1.msra.mxu0 %v994
  %1116 = vmatprep.subr.mxu0 0.0
  %1117 = vmatpush1.msra.mxu0 %v993
  %1118 = vmatprep.subr.mxu0 0.0
  %1119 = vmatpush1.msra.mxu0 %v992
  %1120 = vmatprep.subr.mxu0 0.0
  %1121 = vmatpush1.msra.mxu0 %v991
  %1122 = vmatprep.subr.mxu0 0.0
  %1123 = vmatpush2.msra.mxu0 0.0
  %1124 = vmatprep.subr.mxu0 0.0
  %1125 = vmatpush2.msra.mxu0 0.0
  %1126 = vmatprep.subr.mxu0 0.0
  %1127 = vmatpush2.msra.mxu0 0.0
  %1128 = vmatprep.subr.mxu0 0.0
  %1129 = vmatpush2.msra.mxu0 0.0
  %1130 = vmatprep.subr.mxu0 0.0
  %1131 = vmatpush2.msra.mxu0 0.0
  %1132 = vmatprep.subr.mxu0 0.0
  %1133 = vmatpush2.msra.mxu0 0.0
  %1134 = vmatprep.subr.mxu0 0.0
  %1135 = vmatpush2.msra.mxu0 0.0
  %1136 = vmatprep.subr.mxu0 0.0
  %1137 = vmatpush2.msra.mxu0 0.0
  %1138 = vmatprep.subr.mxu0 0.0
  %1139 = vmatpush2.msra.mxu0 0.0
  %1140 = vmatprep.subr.mxu0 0.0
  %1141 = vmatpush2.msra.mxu0 0.0
  %1142 = vmatprep.subr.mxu0 0.0
  %1143 = vmatpush2.msra.mxu0 0.0
  %1144 = vmatprep.subr.mxu0 0.0
  %1145 = vmatpush2.msra.mxu0 0.0
  %1146 = vmatprep.subr.mxu0 0.0
  %1147 = vmatpush2.msra.mxu0 0.0
  %1148 = vmatprep.subr.mxu0 0.0
  %1149 = vmatpush2.msra.mxu0 0.0
  %1150 = vmatprep.subr.mxu0 0.0
  %1151 = vmatpush2.msra.mxu0 0.0
  %1152 = vmatprep.subr.mxu0 0.0
  %1153 = vmatpush2.msra.mxu0 0.0
  %1154 = vmatprep.mubr.f32.mxu0 0.0
  %1155 = vmatmul.mubr.f32.gmra.mxu0 %v1088
  %v1156 = vpop.f32.mrf.mxu0
  %v1157 = vadd.f32 0.0, %v1156
  %v1158 = vpop.f32.mrf.mxu0
  %1159 = vdwg.mxu0
  %v1160 = vsel %vm1077, %v1157, 0.0
  %v1161 = vrot.slane %v1160, 4
  %v1162 = vadd.f32 %v1160, %v1161
  %v1163 = vrot.slane %v1162, 2
  %v1164 = vadd.f32 %v1162, %v1163
  %v1165 = vrot.slane %v1164, 1
  %v1166 = vadd.f32 %v1164, %v1165
  %v1167 = vmul.f32 %v1166, 0.041666668
  %v1168 = vmul.f32 %v1085, %v1085
  %v1169 = vsub.f32 %v1167, %v1168
  %v1170 = vadd.f32 %v1169, 1e-05
  %v1171 = vrsqrt.pop %v1170
  %v1172 = vmul.f32 %v1001, %v1171
  %v1173 = vmul.f32 %v1085, %v1172
  %v1174 = vsub.f32 %v1002, %v1173
  %v1176 = vsel %vm58, %v1172, 0
  %v1179 = vsel %vm62, %v1000, 0
  %1181 = vmatprep.subr.mxu0 0.0
  %1182 = vmatpush1.msra.mxu0 0.0
  %1183 = vmatprep.subr.mxu0 0.0
  %1184 = vmatpush1.msra.mxu0 0.0
  %1185 = vmatprep.subr.mxu0 0.0
  %1186 = vmatpush1.msra.mxu0 0.0
  %1187 = vmatprep.subr.mxu0 0.0
  %1188 = vmatpush1.msra.mxu0 0.0
  %1189 = vmatprep.subr.mxu0 0.0
  %1190 = vmatpush1.msra.mxu0 0.0
  %1191 = vmatprep.subr.mxu0 0.0
  %1192 = vmatpush1.msra.mxu0 0.0
  %1193 = vmatprep.subr.mxu0 0.0
  %1194 = vmatpush1.msra.mxu0 0.0
  %1195 = vmatprep.subr.mxu0 0.0
  %1196 = vmatpush1.msra.mxu0 0.0
  %1197 = vmatprep.subr.mxu0 0.0
  %1198 = vmatpush1.msra.mxu0 0.0
  %1199 = vmatprep.subr.mxu0 0.0
  %1200 = vmatpush1.msra.mxu0 0.0
  %1201 = vmatprep.subr.mxu0 0.0
  %1202 = vmatpush1.msra.mxu0 0.0
  %1203 = vmatprep.subr.mxu0 0.0
  %1204 = vmatpush1.msra.mxu0 0.0
  %1205 = vmatprep.subr.mxu0 0.0
  %1206 = vmatpush1.msra.mxu0 0.0
  %1207 = vmatprep.subr.mxu0 0.0
  %1208 = vmatpush1.msra.mxu0 0.0
  %1209 = vmatprep.subr.mxu0 0.0
  %1210 = vmatpush1.msra.mxu0 0.0
  %1211 = vmatprep.subr.mxu0 0.0
  %1212 = vmatpush1.msra.mxu0 %v1179
  %1213 = vmatprep.subr.mxu0 0.0
  %1214 = vmatpush2.msra.mxu0 0.0
  %1215 = vmatprep.subr.mxu0 0.0
  %1216 = vmatpush2.msra.mxu0 0.0
  %1217 = vmatprep.subr.mxu0 0.0
  %1218 = vmatpush2.msra.mxu0 0.0
  %1219 = vmatprep.subr.mxu0 0.0
  %1220 = vmatpush2.msra.mxu0 0.0
  %1221 = vmatprep.subr.mxu0 0.0
  %1222 = vmatpush2.msra.mxu0 0.0
  %1223 = vmatprep.subr.mxu0 0.0
  %1224 = vmatpush2.msra.mxu0 0.0
  %1225 = vmatprep.subr.mxu0 0.0
  %1226 = vmatpush2.msra.mxu0 0.0
  %1227 = vmatprep.subr.mxu0 0.0
  %1228 = vmatpush2.msra.mxu0 0.0
  %1229 = vmatprep.subr.mxu0 0.0
  %1230 = vmatpush2.msra.mxu0 0.0
  %1231 = vmatprep.subr.mxu0 0.0
  %1232 = vmatpush2.msra.mxu0 0.0
  %1233 = vmatprep.subr.mxu0 0.0
  %1234 = vmatpush2.msra.mxu0 0.0
  %1235 = vmatprep.subr.mxu0 0.0
  %1236 = vmatpush2.msra.mxu0 0.0
  %1237 = vmatprep.subr.mxu0 0.0
  %1238 = vmatpush2.msra.mxu0 0.0
  %1239 = vmatprep.subr.mxu0 0.0
  %1240 = vmatpush2.msra.mxu0 0.0
  %1241 = vmatprep.subr.mxu0 0.0
  %1242 = vmatpush2.msra.mxu0 0.0
  %1243 = vmatprep.subr.mxu0 0.0
  %1244 = vmatpush2.msra.mxu0 0.0
  %1245 = vmatprep.mubr.f32.mxu0 0.0
  %1246 = vmatmul.mubr.f32.gmra.mxu0 %v1176
  %v1247 = vpop.f32.mrf.mxu0
  %v1248 = vadd.f32 0.0, %v1247
  %v1249 = vpop.f32.mrf.mxu0
  %1250 = vdwg.mxu0
  %v1252 = vsel %vm58, %v1174, 0
  %1254 = vmatprep.subr.mxu0 0.0
  %1255 = vmatpush1.msra.mxu0 0.0
  %1256 = vmatprep.subr.mxu0 0.0
  %1257 = vmatpush1.msra.mxu0 0.0
  %1258 = vmatprep.subr.mxu0 0.0
  %1259 = vmatpush1.msra.mxu0 0.0
  %1260 = vmatprep.subr.mxu0 0.0
  %1261 = vmatpush1.msra.mxu0 0.0
  %1262 = vmatprep.subr.mxu0 0.0
  %1263 = vmatpush1.msra.mxu0 0.0
  %1264 = vmatprep.subr.mxu0 0.0
  %1265 = vmatpush1.msra.mxu0 0.0
  %1266 = vmatprep.subr.mxu0 0.0
  %1267 = vmatpush1.msra.mxu0 0.0
  %1268 = vmatprep.subr.mxu0 0.0
  %1269 = vmatpush1.msra.mxu0 0.0
  %1270 = vmatprep.subr.mxu0 0.0
  %1271 = vmatpush1.msra.mxu0 0.0
  %1272 = vmatprep.subr.mxu0 0.0
  %1273 = vmatpush1.msra.mxu0 0.0
  %1274 = vmatprep.subr.mxu0 0.0
  %1275 = vmatpush1.msra.mxu0 0.0
  %1276 = vmatprep.subr.mxu0 0.0
  %1277 = vmatpush1.msra.mxu0 0.0
  %1278 = vmatprep.subr.mxu0 0.0
  %1279 = vmatpush1.msra.mxu0 0.0
  %1280 = vmatprep.subr.mxu0 0.0
  %1281 = vmatpush1.msra.mxu0 0.0
  %1282 = vmatprep.subr.mxu0 0.0
  %1283 = vmatpush1.msra.mxu0 0.0
  %1284 = vmatprep.subr.mxu0 0.0
  %1285 = vmatpush1.msra.mxu0 %v1179
  %1286 = vmatprep.subr.mxu0 0.0
  %1287 = vmatpush2.msra.mxu0 0.0
  %1288 = vmatprep.subr.mxu0 0.0
  %1289 = vmatpush2.msra.mxu0 0.0
  %1290 = vmatprep.subr.mxu0 0.0
  %1291 = vmatpush2.msra.mxu0 0.0
  %1292 = vmatprep.subr.mxu0 0.0
  %1293 = vmatpush2.msra.mxu0 0.0
  %1294 = vmatprep.subr.mxu0 0.0
  %1295 = vmatpush2.msra.mxu0 0.0
  %1296 = vmatprep.subr.mxu0 0.0
  %1297 = vmatpush2.msra.mxu0 0.0
  %1298 = vmatprep.subr.mxu0 0.0
  %1299 = vmatpush2.msra.mxu0 0.0
  %1300 = vmatprep.subr.mxu0 0.0
  %1301 = vmatpush2.msra.mxu0 0.0
  %1302 = vmatprep.subr.mxu0 0.0
  %1303 = vmatpush2.msra.mxu0 0.0
  %1304 = vmatprep.subr.mxu0 0.0
  %1305 = vmatpush2.msra.mxu0 0.0
  %1306 = vmatprep.subr.mxu0 0.0
  %1307 = vmatpush2.msra.mxu0 0.0
  %1308 = vmatprep.subr.mxu0 0.0
  %1309 = vmatpush2.msra.mxu0 0.0
  %1310 = vmatprep.subr.mxu0 0.0
  %1311 = vmatpush2.msra.mxu0 0.0
  %1312 = vmatprep.subr.mxu0 0.0
  %1313 = vmatpush2.msra.mxu0 0.0
  %1314 = vmatprep.subr.mxu0 0.0
  %1315 = vmatpush2.msra.mxu0 0.0
  %1316 = vmatprep.subr.mxu0 0.0
  %1317 = vmatpush2.msra.mxu0 0.0
  %1318 = vmatprep.mubr.f32.mxu0 0.0
  %1319 = vmatmul.mubr.f32.gmra.mxu0 %v1252
  %v1320 = vpop.f32.mrf.mxu0
  %v1321 = vadd.f32 0.0, %v1320
  %v1322 = vpop.f32.mrf.mxu0
  %1323 = vdwg.mxu0
  %v1324 = vlaneseq
  %v1325 = vshrl.u32 %v1324, 7
  %v1326 = vsub.s32 0, %v1325
  %v1327 = vrot.slane %v1248, %v1326
  %v1328 = vmul.f32 %v988, %v1327
  %v1329 = vlaneseq
  %v1330 = vshrl.u32 %v1329, 7
  %v1331 = vsub.s32 0, %v1330
  %v1332 = vrot.slane %v1321, %v1331
  %v1333 = vadd.f32 %v1328, %v1332
  %v1334 = vmax.f32 %v1333, 0.0
  %v1335 = vld [vmem:[%s16] sm:$0xff]
  %v1336 = vld [vmem:[%s16 + $0x8] sm:$0xff]
  %v1337 = vld [vmem:[%s16 + $0x10] sm:$0xff]
  %v1338 = vld [vmem:[%s16 + $0x18] sm:$0xff]
  %v1339 = vld [vmem:[%s16 + $0x20] sm:$0xff]
  %v1340 = vld [vmem:[%s16 + $0x28] sm:$0xff]
  %v1341 = vld [vmem:[%s16 + $0x30] sm:$0xff]
  %v1342 = vld [vmem:[%s16 + $0x38] sm:$0xff]
  %v1343 = vld [vmem:[%s16 + $0x40] sm:$0xff]
  %v1345 = vsel %vm1003, %v1334, 0
  %1347 = vmatprep.subr.mxu0 0.0
  %1348 = vmatpush1.msra.mxu0 0.0
  %1349 = vmatprep.subr.mxu0 0.0
  %1350 = vmatpush1.msra.mxu0 0.0
  %1351 = vmatprep.subr.mxu0 0.0
  %1352 = vmatpush1.msra.mxu0 0.0
  %1353 = vmatprep.subr.mxu0 0.0
  %1354 = vmatpush1.msra.mxu0 0.0
  %1355 = vmatprep.subr.mxu0 0.0
  %1356 = vmatpush1.msra.mxu0 0.0
  %1357 = vmatprep.subr.mxu0 0.0
  %1358 = vmatpush1.msra.mxu0 0.0
  %1359 = vmatprep.subr.mxu0 0.0
  %1360 = vmatpush1.msra.mxu0 0.0
  %1361 = vmatprep.subr.mxu0 0.0
  %1362 = vmatpush1.msra.mxu0 %v1343
  %1363 = vmatprep.subr.mxu0 0.0
  %1364 = vmatpush1.msra.mxu0 %v1342
  %1365 = vmatprep.subr.mxu0 0.0
  %1366 = vmatpush1.msra.mxu0 %v1341
  %1367 = vmatprep.subr.mxu0 0.0
  %1368 = vmatpush1.msra.mxu0 %v1340
  %1369 = vmatprep.subr.mxu0 0.0
  %1370 = vmatpush1.msra.mxu0 %v1339
  %1371 = vmatprep.subr.mxu0 0.0
  %1372 = vmatpush1.msra.mxu0 %v1338
  %1373 = vmatprep.subr.mxu0 0.0
  %1374 = vmatpush1.msra.mxu0 %v1337
  %1375 = vmatprep.subr.mxu0 0.0
  %1376 = vmatpush1.msra.mxu0 %v1336
  %1377 = vmatprep.subr.mxu0 0.0
  %1378 = vmatpush1.msra.mxu0 %v1335
  %1379 = vmatprep.subr.mxu0 0.0
  %1380 = vmatpush2.msra.mxu0 0.0
  %1381 = vmatprep.subr.mxu0 0.0
  %1382 = vmatpush2.msra.mxu0 0.0
  %1383 = vmatprep.subr.mxu0 0.0
  %1384 = vmatpush2.msra.mxu0 0.0
  %1385 = vmatprep.subr.mxu0 0.0
  %1386 = vmatpush2.msra.mxu0 0.0
  %1387 = vmatprep.subr.mxu0 0.0
  %1388 = vmatpush2.msra.mxu0 0.0
  %1389 = vmatprep.subr.mxu0 0.0
  %1390 = vmatpush2.msra.mxu0 0.0
  %1391 = vmatprep.subr.mxu0 0.0
  %1392 = vmatpush2.msra.mxu0 0.0
  %1393 = vmatprep.subr.mxu0 0.0
  %1394 = vmatpush2.msra.mxu0 0.0
  %1395 = vmatprep.subr.mxu0 0.0
  %1396 = vmatpush2.msra.mxu0 0.0
  %1397 = vmatprep.subr.mxu0 0.0
  %1398 = vmatpush2.msra.mxu0 0.0
  %1399 = vmatprep.subr.mxu0 0.0
  %1400 = vmatpush2.msra.mxu0 0.0
  %1401 = vmatprep.subr.mxu0 0.0
  %1402 = vmatpush2.msra.mxu0 0.0
  %1403 = vmatprep.subr.mxu0 0.0
  %1404 = vmatpush2.msra.mxu0 0.0
  %1405 = vmatprep.subr.mxu0 0.0
  %1406 = vmatpush2.msra.mxu0 0.0
  %1407 = vmatprep.subr.mxu0 0.0
  %1408 = vmatpush2.msra.mxu0 0.0
  %1409 = vmatprep.subr.mxu0 0.0
  %1410 = vmatpush2.msra.mxu0 0.0
  %1411 = vmatprep.mubr.f32.mxu0 0.0
  %1412 = vmatmul.mubr.f32.gmra.mxu0 %v1345
  %v1413 = vpop.f32.mrf.mxu0
  %v1414 = vadd.f32 0.0, %v1413
  %v1415 = vpop.f32.mrf.mxu0
  %1416 = vdwg.mxu0
  %vm1417 = vcmask 386048
  %1418 = vst.msk [vmem:[%s17] sm:$0x3] %vm1417, %v1414
  // Predicated region
  $region70: #{ccnn_generator.1} parent=0 // pred_check
    _
  $region71: #{ccnn_generator.1} parent=0 // pred_check_branch
    %1420 = sbr.rel (0) target = $region73
  $region72: #{ccnn_generator.1} parent=0 // pred_region
    _
  $region73: #{ccnn_generator.1} parent=0 // pred_fallthru
    _
  // Predicated region
  $region74: #{ccnn_generator.1} parent=0 // pred_check
    _
  $region75: #{ccnn_generator.1} parent=0 // pred_check_branch
    %1422 = sbr.rel (0) target = $region77
  $region76: #{ccnn_generator.1} parent=0 // pred_region
    _
  $region77: #{ccnn_generator.1} parent=0 // pred_fallthru
    _

</llo_original>
